<compile_context>
chip_gen: v6e
topology: v6e:2x2x1
jax: 0.10.0
libtpu: 0.0.40
codegen_flags: <defaults>
</compile_context>

<pallas_src>
import functools

import jax
import jax.numpy as jnp
import numpy as np
from jax.experimental import pallas as pl
from jax.experimental.pallas import tpu as pltpu


def _round_up(x, m):
    return ((x + m - 1) // m) * m


def _cdiv(a, b):
    return -(-a // b)


# ----------------------------- Pallas kernel ------------------------------- #
def _make_embed_mlp_kernel(vocab_offsets, v_total, compute_dtype):
    """Build the fused kernel, closed over static vocab offsets."""
    n_tab = len(vocab_offsets)

    def kernel(cate_ref, num_ref, folded_ref, w1n_ref, b1_ref, w2_ref,
               b2_ref, o_ref):
        tb = cate_ref.shape[0]

        # ---- Stacked one-hot over all vocabularies -------------------------
        # Lane j belongs to table t iff offset[t] <= j < offset[t+1]; lane j
        # is hot for row b iff cate[b, t] + offset[t] == j.  Offsets are
        # static Python ints, so this is n_tab VPU compares + ORs, no gather.
        giota = jax.lax.broadcasted_iota(jnp.int32, (tb, v_total), 1)
        hot = (cate_ref[:, 0:1] + vocab_offsets[0]) == giota
        for t in range(1, n_tab):
            hot = hot | ((cate_ref[:, t:t + 1] + vocab_offsets[t]) == giota)
        onehot = hot.astype(compute_dtype)                     # (TB, sum(V))

        # ---- Layer 1: single folded-embedding matmul + numeric matmul ------
        # onehot @ (stacked tables @ W1_emb)  ==  concat(embs) @ W1_emb exactly
        # (fold done in f32 in the wrapper; one bf16 rounding of the product).
        h = jnp.dot(onehot, folded_ref[...],
                    preferred_element_type=jnp.float32)        # (TB, 64) f32
        h = h + jnp.dot(num_ref[...].astype(compute_dtype), w1n_ref[...],
                        preferred_element_type=jnp.float32)
        h = jnp.maximum(h + b1_ref[...], 0.0)                  # f32 VPU

        # ---- Layer 2 --------------------------------------------------------
        o = jnp.dot(h.astype(compute_dtype), w2_ref[...],
                    preferred_element_type=jnp.float32)        # (TB, 32)
        o_ref[...] = jnp.maximum(o + b2_ref[...], 0.0).astype(o_ref.dtype)

    return kernel


# --------------------------- Batch tile selection --------------------------- #
def _pick_batch_tile(B, block_b):
    """Pick a batch tile that (a) divides the batch nearly evenly and
    (b) yields a grid of >= 2 steps so v7x megacore can shard the batch."""
    n_tiles = max(1, _cdiv(B, block_b))
    if n_tiles == 1 and B > 8:
        n_tiles = 2                       # keep >= 2 grid steps for 2-TC chips
    bb = max(8, _round_up(_cdiv(B, n_tiles), 8))
    return bb


# ------------------------------ Pallas wrapper ------------------------------ #
def embed_nn_pallas(tables, mlp_params, cate_inputs, num_inputs, *,
                    block_b=1024, compute_dtype=jnp.bfloat16,
                    out_dtype=jnp.float32):
    """Fused embedding-gather + 2-layer-MLP forward on TPU via pallas_call."""
    w1, b1, w2, b2 = mlp_params
    n_tab = len(tables)
    dims = [int(t.shape[1]) for t in tables]
    vocabs = [int(t.shape[0]) for t in tables]
    emb_total = int(np.sum(dims))
    num_dim = int(num_inputs.shape[1])
    hidden = int(w1.shape[1])
    out_dim = int(w2.shape[1])
    B = int(cate_inputs.shape[0])
    n_cat = int(cate_inputs.shape[1])

    v_offs = np.concatenate([[0], np.cumsum(vocabs)]).astype(np.int64)
    v_total = int(v_offs[-1])
    d_offs = np.concatenate([[0], np.cumsum(dims)]).astype(np.int64)

    # ---- Wrapper-side algebra (trace-time, f32): fold tables into W1 -------
    # folded[v_offs[t]:v_offs[t+1], :] = tables[t] @ W1[d_offs[t]:d_offs[t+1]]
    folded = jnp.concatenate(
        [tables[t].astype(jnp.float32)
         @ w1[int(d_offs[t]):int(d_offs[t + 1]), :].astype(jnp.float32)
         for t in range(n_tab)],
        axis=0)                                               # (sum(V), 64)
    folded = folded.astype(compute_dtype)                     # resident bf16
    w1_num = w1[emb_total:, :].astype(compute_dtype)          # (num_dim, 64)
    w2_c = w2.astype(compute_dtype)                           # (64, 32)
    b1_f = b1.astype(jnp.float32)
    b2_f = b2.astype(jnp.float32)

    # ---- Batch tiling / padding ---------------------------------------------
    bb = _pick_batch_tile(B, block_b)
    B_pad = _round_up(B, bb)
    if B_pad != B:   # pad with valid (index 0) rows; sliced off afterwards
        cate_inputs = jnp.pad(cate_inputs, ((0, B_pad - B), (0, 0)))
        num_inputs = jnp.pad(num_inputs, ((0, B_pad - B), (0, 0)))
    grid = (B_pad // bb,)

    kernel = _make_embed_mlp_kernel(tuple(int(o) for o in v_offs[:-1]),
                                    v_total, compute_dtype)

    def const_spec(a):  # full-array block, resident in VMEM across the grid
        return pl.BlockSpec(a.shape, lambda i: (0, 0))

    # ---- VMEM budget: real double-buffered footprint + headroom -------------
    # Each streamed (bb, <=32) block pads its lane dim to 128 -> 512 B/row.
    stream_bytes = 2 * bb * (3 * 128 * 4)          # cate + num + out, 2 bufs
    param_bytes = sum(int(np.prod(a.shape)) * jnp.dtype(a.dtype).itemsize
                      for a in (folded, w1_num, w2_c, b1_f, b2_f))
    vmem_limit = int(min(48 << 20, stream_bytes + param_bytes + (8 << 20)))

    # ---- Honest cost estimate (post-fold, bf16 params) -----------------------
    flops = 2 * B_pad * (v_total * hidden + num_dim * hidden
                         + hidden * out_dim)
    bytes_accessed = (B_pad * n_cat * 4 + B_pad * num_dim * 4
                      + B_pad * out_dim * jnp.dtype(out_dtype).itemsize
                      + param_bytes)

    out = pl.pallas_call(
        kernel,
        out_shape=jax.ShapeDtypeStruct((B_pad, out_dim), out_dtype),
        grid_spec=pltpu.PrefetchScalarGridSpec(
            num_scalar_prefetch=0,
            grid=grid,
            in_specs=[pl.BlockSpec((bb, n_cat), lambda i: (i, 0)),
                      pl.BlockSpec((bb, num_dim), lambda i: (i, 0)),
                      const_spec(folded), const_spec(w1_num),
                      const_spec(b1_f), const_spec(w2_c), const_spec(b2_f)],
            out_specs=pl.BlockSpec((bb, out_dim), lambda i: (i, 0)),
        ),
        compiler_params=pltpu.CompilerParams(
            dimension_semantics=("parallel",),
            vmem_limit_bytes=vmem_limit),
        cost_estimate=pl.CostEstimate(flops=flops, transcendentals=0,
                                      bytes_accessed=bytes_accessed),
    )(cate_inputs, num_inputs, folded, w1_num, b1_f, w2_c, b2_f)

    return out[:B] if B_pad != B else out


# --------------------------- Reference / dispatcher ------------------------- #
def embed_nn_reference(tables, mlp_params, cate_inputs, num_inputs):
    """Plain-JAX f32 reference (exact module semantics)."""
    w1, b1, w2, b2 = mlp_params
    embs = [jnp.take(tables[i], cate_inputs[:, i], axis=0)
            for i in range(len(tables))]
    x = jnp.concatenate(embs + [num_inputs], axis=1)
    h = jnp.maximum(x @ w1 + b1, 0.0)
    return jnp.maximum(h @ w2 + b2, 0.0)


def embed_nn_forward(tables, mlp_params, cate_inputs, num_inputs, *,
                     block_b=1024, min_pallas_batch=256,
                     compute_dtype=jnp.bfloat16, out_dtype=jnp.float32):
    # Note: batches below min_pallas_batch take the f32 XLA path (kernel
    # invocation overhead dominates there); results differ slightly in the
    # last bf16 bits across the threshold.
    B = cate_inputs.shape[0]
    if B < min_pallas_batch:
        return embed_nn_reference(tables, mlp_params, cate_inputs, num_inputs)
    return embed_nn_pallas(tables, mlp_params, cate_inputs, num_inputs,
                           block_b=block_b, compute_dtype=compute_dtype,
                           out_dtype=out_dtype)


# ------------------------------ Parameter init ------------------------------ #
def init_params(key, embedding_input, embedding_dim, num_dim):
    """Deterministic parameter init mirroring the module's __init__ shapes."""
    keys = jax.random.split(key, len(embedding_input) + 4)
    tables = [
        jax.random.normal(keys[i], (embedding_input[i], embedding_dim[i]),
                          dtype=jnp.float32)
        for i in range(len(embedding_input))
    ]
    input_dim = int(np.sum(embedding_dim)) + num_dim
    k_w1, k_b1, k_w2, k_b2 = keys[-4:]
    lim1 = 1.0 / np.sqrt(input_dim)
    w1 = jax.random.uniform(k_w1, (input_dim, 64), jnp.float32, -lim1, lim1)
    b1 = jax.random.uniform(k_b1, (1, 64), jnp.float32, -lim1, lim1)
    lim2 = 1.0 / np.sqrt(64)
    w2 = jax.random.uniform(k_w2, (64, 32), jnp.float32, -lim2, lim2)
    b2 = jax.random.uniform(k_b2, (1, 32), jnp.float32, -lim2, lim2)
    return tables, (w1, b1, w2, b2)


# ---------------------------------- Main ------------------------------------ #
if __name__ == "__main__":
    # Module-consistent small shapes; batch large enough to exercise the
    # batch-tiled grid (>= 2 parallel steps) and the pallas path.
    embedding_input = [10, 7, 5]      # vocab sizes (sum = 22)
    embedding_dim = [8, 4, 4]         # sum = 16
    num_dim = 16                      # input_dim = 16 + 16 = 32
    batch = 512
    block_b = 256                     # -> bb=256, grid=(2,) (2 parallel tiles)

    key = jax.random.PRNGKey(0)
    k_params, k_cat, k_num = jax.random.split(key, 3)

    tables, mlp_params = init_params(k_params, embedding_input,
                                     embedding_dim, num_dim)

    cate_inputs = jnp.stack(
        [jax.random.randint(jax.random.fold_in(k_cat, i), (batch,), 0,
                            embedding_input[i], dtype=jnp.int32)
         for i in range(len(embedding_input))],
        axis=1,
    )                                                     # (B, 3) int32
    num_inputs = jax.random.normal(k_num, (batch, num_dim), jnp.float32)

    fwd = jax.jit(functools.partial(embed_nn_forward, block_b=block_b))
    out = jax.block_until_ready(fwd(tables, mlp_params, cate_inputs,
                                    num_inputs))

    ref = embed_nn_reference(tables, mlp_params, cate_inputs, num_inputs)
    assert out.shape == (batch, 32)
    # bf16 MXU operands with f32 accumulation -> loosened tolerance vs f32 ref.
    np.testing.assert_allclose(np.asarray(out), np.asarray(ref),
                               rtol=5e-2, atol=5e-2)

    print("KERNEL_OK")
</pallas_src>

<mosaic_0001>
module attributes {stable_mosaic.version = 11 : i64} {
  func.func @kernel(%arg0: i32, %arg1: memref<256x3xi32, #tpu.memory_space<vmem>>, %arg2: memref<256x16xf32, #tpu.memory_space<vmem>>, %arg3: memref<22x64xbf16, #tpu.memory_space<vmem>>, %arg4: memref<16x64xbf16, #tpu.memory_space<vmem>>, %arg5: memref<1x64xf32, #tpu.memory_space<vmem>>, %arg6: memref<64x32xbf16, #tpu.memory_space<vmem>>, %arg7: memref<1x32xf32, #tpu.memory_space<vmem>>, %arg8: memref<256x32xf32, #tpu.memory_space<vmem>>) attributes {dimension_semantics = [#tpu.dimension_semantics<parallel>], iteration_bounds = array<i64: 2>, scalar_prefetch = 0 : i64, scratch_operands = 0 : i64, tpu.core_type = #tpu.core_type<tc>, window_params = [{transform_indices = @transform_0, window_bounds = array<i64: 256, 3>}, {transform_indices = @transform_1, window_bounds = array<i64: 256, 16>}, {pipeline_mode = #tpu.pipeline_mode<synchronous>, transform_indices = @transform_2, window_bounds = array<i64: 22, 64>}, {pipeline_mode = #tpu.pipeline_mode<synchronous>, transform_indices = @transform_3, window_bounds = array<i64: 16, 64>}, {pipeline_mode = #tpu.pipeline_mode<synchronous>, transform_indices = @transform_4, window_bounds = array<i64: 1, 64>}, {pipeline_mode = #tpu.pipeline_mode<synchronous>, transform_indices = @transform_5, window_bounds = array<i64: 64, 32>}, {pipeline_mode = #tpu.pipeline_mode<synchronous>, transform_indices = @transform_6, window_bounds = array<i64: 1, 32>}, {transform_indices = @transform_7, window_bounds = array<i64: 256, 32>}]} {
    %0 = tpu.iota {dimensions = array<i32: 1>} : vector<256x22xi32>
    %c0 = arith.constant 0 : index
    %c0_0 = arith.constant 0 : index
    %1 = vector.load %arg1[%c0, %c0_0] : memref<256x3xi32, #tpu.memory_space<vmem>>, vector<256x1xi32>
    %c0_i32 = arith.constant 0 : i32
    %2 = vector.broadcast %c0_i32 : i32 to vector<256x1xi32>
    %3 = arith.addi %1, %2 : vector<256x1xi32>
    %4 = vector.broadcast %3 : vector<256x1xi32> to vector<256x22xi32>
    %5 = arith.cmpi eq, %4, %0 : vector<256x22xi32>
    %c0_1 = arith.constant 0 : index
    %c1 = arith.constant 1 : index
    %6 = vector.load %arg1[%c0_1, %c1] : memref<256x3xi32, #tpu.memory_space<vmem>>, vector<256x1xi32>
    %c10_i32 = arith.constant 10 : i32
    %7 = vector.broadcast %c10_i32 : i32 to vector<256x1xi32>
    %8 = arith.addi %6, %7 : vector<256x1xi32>
    %9 = vector.broadcast %8 : vector<256x1xi32> to vector<256x22xi32>
    %10 = arith.cmpi eq, %9, %0 : vector<256x22xi32>
    %11 = arith.ori %5, %10 : vector<256x22xi1>
    %c0_2 = arith.constant 0 : index
    %c2 = arith.constant 2 : index
    %12 = vector.load %arg1[%c0_2, %c2] : memref<256x3xi32, #tpu.memory_space<vmem>>, vector<256x1xi32>
    %c17_i32 = arith.constant 17 : i32
    %13 = vector.broadcast %c17_i32 : i32 to vector<256x1xi32>
    %14 = arith.addi %12, %13 : vector<256x1xi32>
    %15 = vector.broadcast %14 : vector<256x1xi32> to vector<256x22xi32>
    %16 = arith.cmpi eq, %15, %0 : vector<256x22xi32>
    %17 = arith.ori %11, %16 : vector<256x22xi1>
    %18 = arith.extui %17 : vector<256x22xi1> to vector<256x22xi32>
    %19 = arith.sitofp %18 : vector<256x22xi32> to vector<256x22xf32>
    %20 = arith.truncf %19 : vector<256x22xf32> to vector<256x22xbf16>
    %c0_3 = arith.constant 0 : index
    %c0_4 = arith.constant 0 : index
    %21 = vector.load %arg3[%c0_3, %c0_4] : memref<22x64xbf16, #tpu.memory_space<vmem>>, vector<22x64xbf16>
    %cst = arith.constant dense<0.000000e+00> : vector<256x64xf32>
    %22 = tpu.matmul %20, %21, %cst {dimension_numbers = #tpu.dot_dimension_numbers<[1], [0], [0], [1], [0, 0, 1, 1], [], []>} : vector<256x22xbf16>, vector<22x64xbf16>, vector<256x64xf32> -> vector<256x64xf32>
    %c0_5 = arith.constant 0 : index
    %c0_6 = arith.constant 0 : index
    %23 = vector.load %arg2[%c0_5, %c0_6] : memref<256x16xf32, #tpu.memory_space<vmem>>, vector<256x16xf32>
    %24 = arith.truncf %23 : vector<256x16xf32> to vector<256x16xbf16>
    %c0_7 = arith.constant 0 : index
    %c0_8 = arith.constant 0 : index
    %25 = vector.load %arg4[%c0_7, %c0_8] : memref<16x64xbf16, #tpu.memory_space<vmem>>, vector<16x64xbf16>
    %cst_9 = arith.constant dense<0.000000e+00> : vector<256x64xf32>
    %26 = tpu.matmul %24, %25, %cst_9 {dimension_numbers = #tpu.dot_dimension_numbers<[1], [0], [0], [1], [0, 0, 1, 1], [], []>} : vector<256x16xbf16>, vector<16x64xbf16>, vector<256x64xf32> -> vector<256x64xf32>
    %27 = arith.addf %22, %26 : vector<256x64xf32>
    %c0_10 = arith.constant 0 : index
    %c0_11 = arith.constant 0 : index
    %28 = vector.load %arg5[%c0_10, %c0_11] : memref<1x64xf32, #tpu.memory_space<vmem>>, vector<1x64xf32>
    %29 = vector.broadcast %28 : vector<1x64xf32> to vector<256x64xf32>
    %30 = arith.addf %27, %29 : vector<256x64xf32>
    %cst_12 = arith.constant 0.000000e+00 : f32
    %31 = vector.broadcast %cst_12 : f32 to vector<256x64xf32>
    %32 = arith.maximumf %30, %31 : vector<256x64xf32>
    %33 = arith.truncf %32 : vector<256x64xf32> to vector<256x64xbf16>
    %c0_13 = arith.constant 0 : index
    %c0_14 = arith.constant 0 : index
    %34 = vector.load %arg6[%c0_13, %c0_14] : memref<64x32xbf16, #tpu.memory_space<vmem>>, vector<64x32xbf16>
    %cst_15 = arith.constant dense<0.000000e+00> : vector<256x32xf32>
    %35 = tpu.matmul %33, %34, %cst_15 {dimension_numbers = #tpu.dot_dimension_numbers<[1], [0], [0], [1], [0, 0, 1, 1], [], []>} : vector<256x64xbf16>, vector<64x32xbf16>, vector<256x32xf32> -> vector<256x32xf32>
    %c0_16 = arith.constant 0 : index
    %c0_17 = arith.constant 0 : index
    %36 = vector.load %arg7[%c0_16, %c0_17] : memref<1x32xf32, #tpu.memory_space<vmem>>, vector<1x32xf32>
    %37 = vector.broadcast %36 : vector<1x32xf32> to vector<256x32xf32>
    %38 = arith.addf %35, %37 : vector<256x32xf32>
    %cst_18 = arith.constant 0.000000e+00 : f32
    %39 = vector.broadcast %cst_18 : f32 to vector<256x32xf32>
    %40 = arith.maximumf %38, %39 : vector<256x32xf32>
    %c0_19 = arith.constant 0 : index
    %c0_20 = arith.constant 0 : index
    %41 = vector.load %arg8[%c0_19, %c0_20] : memref<256x32xf32, #tpu.memory_space<vmem>>, vector<256x32xf32>
    tpu.vector_store %arg8[%c0_19, %c0_20], %40 {strides = array<i32>} : memref<256x32xf32, #tpu.memory_space<vmem>>, vector<256x32xf32>,
    return
  }
  func.func @transform_0(%arg0: i32) -> (i32, i32) {
    %c0_i32 = arith.constant 0 : i32
    %c0_i32_0 = arith.constant 0 : i32
    return %arg0, %c0_i32 : i32, i32
  }
  func.func @transform_1(%arg0: i32) -> (i32, i32) {
    %c0_i32 = arith.constant 0 : i32
    %c0_i32_0 = arith.constant 0 : i32
    return %arg0, %c0_i32 : i32, i32
  }
  func.func @transform_2(%arg0: i32) -> (i32, i32) {
    %c0_i32 = arith.constant 0 : i32
    %c0_i32_0 = arith.constant 0 : i32
    %c0_i32_1 = arith.constant 0 : i32
    return %c0_i32, %c0_i32_0 : i32, i32
  }
  func.func @transform_3(%arg0: i32) -> (i32, i32) {
    %c0_i32 = arith.constant 0 : i32
    %c0_i32_0 = arith.constant 0 : i32
    %c0_i32_1 = arith.constant 0 : i32
    return %c0_i32, %c0_i32_0 : i32, i32
  }
  func.func @transform_4(%arg0: i32) -> (i32, i32) {
    %c0_i32 = arith.constant 0 : i32
    %c0_i32_0 = arith.constant 0 : i32
    %c0_i32_1 = arith.constant 0 : i32
    return %c0_i32, %c0_i32_0 : i32, i32
  }
  func.func @transform_5(%arg0: i32) -> (i32, i32) {
    %c0_i32 = arith.constant 0 : i32
    %c0_i32_0 = arith.constant 0 : i32
    %c0_i32_1 = arith.constant 0 : i32
    return %c0_i32, %c0_i32_0 : i32, i32
  }
  func.func @transform_6(%arg0: i32) -> (i32, i32) {
    %c0_i32 = arith.constant 0 : i32
    %c0_i32_0 = arith.constant 0 : i32
    %c0_i32_1 = arith.constant 0 : i32
    return %c0_i32, %c0_i32_0 : i32, i32
  }
  func.func @transform_7(%arg0: i32) -> (i32, i32) {
    %c0_i32 = arith.constant 0 : i32
    %c0_i32_0 = arith.constant 0 : i32
    return %arg0, %c0_i32 : i32, i32
  }
}

</mosaic_0001>

<llo_original>
// kernel: embed_nn_forward.1
$region0: #{embed_nn_forward.1}
  #allocation0 [shape = 'u32[]', space=smem, size = 0x4, offset = 0x4, fixed_abs, tag = 'smem constant byte address 0x4 - core index']
  #allocation1 [shape = 'u32[144,128]{1,0:T(1,128)}', space=vmem, size = 0x12000, scoped, tag = 'internal scratch']
  %s0 = inlined_call_operand.vmem [shape: s32[512,3], index: 0, kind: input, shape index: {}]
  %s1 = inlined_call_operand.vmem [shape: f32[512,16], index: 1, kind: input, shape index: {}]
  %s2 = inlined_call_operand.vmem [shape: bf16[22,64], index: 2, kind: input, shape index: {}]
  %s3 = inlined_call_operand.vmem [shape: bf16[16,64], index: 3, kind: input, shape index: {}]
  %s4 = inlined_call_operand.vmem [shape: f32[1,64], index: 4, kind: input, shape index: {}]
  %s5 = inlined_call_operand.vmem [shape: bf16[64,32], index: 5, kind: input, shape index: {}]
  %s6 = inlined_call_operand.vmem [shape: f32[1,32], index: 6, kind: input, shape index: {}]
  %s7 = inlined_call_operand.vmem [shape: f32[512,32], index: 7, kind: output, shape index: {}]
  %s8 = sld [smem:[#allocation0]]
  $region61: #{embed_nn_forward.1} parent=0
    _
  %s10 = ssub.s32 1, %s8
  %s11 = scalar_select 0, %s10, %s8
  loop: start=0, step=1, limit=4
  $region2: #{embed_nn_forward.1} parent=0 // loop_pre_header
    _
  $region3: #{embed_nn_forward.1} parent=0 // loop_header
    %s13 = sphi 0, %s17
    %p14 = scmp.ge.s32.totalorder %s13, 4
    %s23 = sphi 0, %s25
    %s26 = sphi 0, %s23
    %s27 = sphi 0, %s26
    %s43 = sphi 0, %s27
    %s49 = sphi 0, %s51
    %s52 = sphi 0, %s49
    %s53 = sphi 0, %s52
    %s69 = sphi 0, %s53
    %s73 = sphi 0, %s73
    %s75 = sphi 0, %s73
    %s76 = sphi 0, %s75
    %s90 = sphi 0, %s76
    %s94 = sphi 0, %s94
    %s96 = sphi 0, %s94
    %s97 = sphi 0, %s96
    %s111 = sphi 0, %s97
    %s115 = sphi 0, %s115
    %s117 = sphi 0, %s115
    %s118 = sphi 0, %s117
    %s132 = sphi 0, %s118
    %s136 = sphi 0, %s136
    %s138 = sphi 0, %s136
    %s139 = sphi 0, %s138
    %s153 = sphi 0, %s139
    %s157 = sphi 0, %s157
    %s159 = sphi 0, %s157
    %s160 = sphi 0, %s159
    %s174 = sphi 0, %s160
    %s180 = sphi 0, %s182
    %s183 = sphi 0, %s180
    %s184 = sphi 0, %s183
    %s200 = sphi 0, %s184
  $region4: #{embed_nn_forward.1} parent=0 // loop_header_branch
    %16 = sbr.rel (%p14) target = $region8
  $region5: #{embed_nn_forward.1} parent=0 // loop_body
    %s18 = ssub.s32 %s13, 1
    %s19 = ssub.s32 %s13, 2
    %s20 = sadd.s32 %s13, 1
    %s21 = ssub.s32 %s13, %s20
    %p22 = scmp.eq.s32.totalorder %s21, 0
    %s24 = sadd.s32 %s23, 1
    %s25 = scalar_select %p22, %s23, %s24
    %p28 = pneg %p22
    %p29 = scmp.eq.s32.totalorder %s13, 1
    %p30 = por %p28, %p29
    %p31 = scmp.ne.s32.totalorder %s23, %s26
    %p32 = scmp.eq.s32.totalorder %s13, 0
    %p33 = por %p31, %p32
    %p34 = scmp.ne.s32.totalorder %s23, %s26
    %p35 = scmp.eq.s32.totalorder %s18, 1
    %p36 = por %p34, %p35
    %p37 = scmp.ne.s32.totalorder %s26, %s27
    %p38 = scmp.eq.s32.totalorder %s18, 0
    %p39 = por %p37, %p38
    %p40 = scmp.ne.s32.totalorder %s26, %s27
    %p41 = scmp.eq.s32.totalorder %s19, 1
    %p42 = por %p40, %p41
    %p44 = scmp.ne.s32.totalorder %s27, %s43
    %p45 = scmp.eq.s32.totalorder %s19, 0
    %p46 = por %p44, %p45
    %s47 = ssub.s32 %s13, %s20
    %p48 = scmp.eq.s32.totalorder %s47, 0
    %s50 = sadd.s32 %s49, 1
    %s51 = scalar_select %p48, %s49, %s50
    %p54 = pneg %p48
    %p55 = scmp.eq.s32.totalorder %s13, 1
    %p56 = por %p54, %p55
    %p57 = scmp.ne.s32.totalorder %s49, %s52
    %p58 = scmp.eq.s32.totalorder %s13, 0
    %p59 = por %p57, %p58
    %p60 = scmp.ne.s32.totalorder %s49, %s52
    %p61 = scmp.eq.s32.totalorder %s18, 1
    %p62 = por %p60, %p61
    %p63 = scmp.ne.s32.totalorder %s52, %s53
    %p64 = scmp.eq.s32.totalorder %s18, 0
    %p65 = por %p63, %p64
    %p66 = scmp.ne.s32.totalorder %s52, %s53
    %p67 = scmp.eq.s32.totalorder %s19, 1
    %p68 = por %p66, %p67
    %p70 = scmp.ne.s32.totalorder %s53, %s69
    %p71 = scmp.eq.s32.totalorder %s19, 0
    %p72 = por %p70, %p71
    %s74 = sadd.s32 %s73, 1
    %p77 = scmp.eq.s32.totalorder %s13, 1
    %p78 = scmp.ne.s32.totalorder %s73, %s75
    %p79 = scmp.eq.s32.totalorder %s13, 0
    %p80 = por %p78, %p79
    %p81 = scmp.ne.s32.totalorder %s73, %s75
    %p82 = scmp.eq.s32.totalorder %s18, 1
    %p83 = por %p81, %p82
    %p84 = scmp.ne.s32.totalorder %s75, %s76
    %p85 = scmp.eq.s32.totalorder %s18, 0
    %p86 = por %p84, %p85
    %p87 = scmp.ne.s32.totalorder %s75, %s76
    %p88 = scmp.eq.s32.totalorder %s19, 1
    %p89 = por %p87, %p88
    %p91 = scmp.ne.s32.totalorder %s76, %s90
    %p92 = scmp.eq.s32.totalorder %s19, 0
    %p93 = por %p91, %p92
    %s95 = sadd.s32 %s94, 1
    %p98 = scmp.eq.s32.totalorder %s13, 1
    %p99 = scmp.ne.s32.totalorder %s94, %s96
    %p100 = scmp.eq.s32.totalorder %s13, 0
    %p101 = por %p99, %p100
    %p102 = scmp.ne.s32.totalorder %s94, %s96
    %p103 = scmp.eq.s32.totalorder %s18, 1
    %p104 = por %p102, %p103
    %p105 = scmp.ne.s32.totalorder %s96, %s97
    %p106 = scmp.eq.s32.totalorder %s18, 0
    %p107 = por %p105, %p106
    %p108 = scmp.ne.s32.totalorder %s96, %s97
    %p109 = scmp.eq.s32.totalorder %s19, 1
    %p110 = por %p108, %p109
    %p112 = scmp.ne.s32.totalorder %s97, %s111
    %p113 = scmp.eq.s32.totalorder %s19, 0
    %p114 = por %p112, %p113
    %s116 = sadd.s32 %s115, 1
    %p119 = scmp.eq.s32.totalorder %s13, 1
    %p120 = scmp.ne.s32.totalorder %s115, %s117
    %p121 = scmp.eq.s32.totalorder %s13, 0
    %p122 = por %p120, %p121
    %p123 = scmp.ne.s32.totalorder %s115, %s117
    %p124 = scmp.eq.s32.totalorder %s18, 1
    %p125 = por %p123, %p124
    %p126 = scmp.ne.s32.totalorder %s117, %s118
    %p127 = scmp.eq.s32.totalorder %s18, 0
    %p128 = por %p126, %p127
    %p129 = scmp.ne.s32.totalorder %s117, %s118
    %p130 = scmp.eq.s32.totalorder %s19, 1
    %p131 = por %p129, %p130
    %p133 = scmp.ne.s32.totalorder %s118, %s132
    %p134 = scmp.eq.s32.totalorder %s19, 0
    %p135 = por %p133, %p134
    %s137 = sadd.s32 %s136, 1
    %p140 = scmp.eq.s32.totalorder %s13, 1
    %p141 = scmp.ne.s32.totalorder %s136, %s138
    %p142 = scmp.eq.s32.totalorder %s13, 0
    %p143 = por %p141, %p142
    %p144 = scmp.ne.s32.totalorder %s136, %s138
    %p145 = scmp.eq.s32.totalorder %s18, 1
    %p146 = por %p144, %p145
    %p147 = scmp.ne.s32.totalorder %s138, %s139
    %p148 = scmp.eq.s32.totalorder %s18, 0
    %p149 = por %p147, %p148
    %p150 = scmp.ne.s32.totalorder %s138, %s139
    %p151 = scmp.eq.s32.totalorder %s19, 1
    %p152 = por %p150, %p151
    %p154 = scmp.ne.s32.totalorder %s139, %s153
    %p155 = scmp.eq.s32.totalorder %s19, 0
    %p156 = por %p154, %p155
    %s158 = sadd.s32 %s157, 1
    %p161 = scmp.eq.s32.totalorder %s13, 1
    %p162 = scmp.ne.s32.totalorder %s157, %s159
    %p163 = scmp.eq.s32.totalorder %s13, 0
    %p164 = por %p162, %p163
    %p165 = scmp.ne.s32.totalorder %s157, %s159
    %p166 = scmp.eq.s32.totalorder %s18, 1
    %p167 = por %p165, %p166
    %p168 = scmp.ne.s32.totalorder %s159, %s160
    %p169 = scmp.eq.s32.totalorder %s18, 0
    %p170 = por %p168, %p169
    %p171 = scmp.ne.s32.totalorder %s159, %s160
    %p172 = scmp.eq.s32.totalorder %s19, 1
    %p173 = por %p171, %p172
    %p175 = scmp.ne.s32.totalorder %s160, %s174
    %p176 = scmp.eq.s32.totalorder %s19, 0
    %p177 = por %p175, %p176
    %s178 = ssub.s32 %s13, %s20
    %p179 = scmp.eq.s32.totalorder %s178, 0
    %s181 = sadd.s32 %s180, 1
    %s182 = scalar_select %p179, %s180, %s181
    %p185 = pneg %p179
    %p186 = scmp.eq.s32.totalorder %s13, 1
    %p187 = por %p185, %p186
    %p188 = scmp.ne.s32.totalorder %s180, %s183
    %p189 = scmp.eq.s32.totalorder %s13, 0
    %p190 = por %p188, %p189
    %p191 = scmp.ne.s32.totalorder %s180, %s183
    %p192 = scmp.eq.s32.totalorder %s18, 1
    %p193 = por %p191, %p192
    %p194 = scmp.ne.s32.totalorder %s183, %s184
    %p195 = scmp.eq.s32.totalorder %s18, 0
    %p196 = por %p194, %p195
    %p197 = scmp.ne.s32.totalorder %s183, %s184
    %p198 = scmp.eq.s32.totalorder %s19, 1
    %p199 = por %p197, %p198
    %p201 = scmp.ne.s32.totalorder %s184, %s200
    %p202 = scmp.eq.s32.totalorder %s19, 0
    %p203 = por %p201, %p202
    %p204 = scmp.le.s32.totalorder 1, %s13
    %p205 = scmp.lt.s32.totalorder %s13, 3
    %p206 = pnand %p204, %p205
    %p207 = pneg %p206
    // Predicated region
    $region9: #{embed_nn_forward.1} parent=5 // pred_check
      _
    $region10: #{embed_nn_forward.1} parent=5 // pred_check_branch
      %209 = sbr.rel (%p206) target = $region12
    $region11: #{embed_nn_forward.1} parent=5 // pred_region
      %s210 = ssub.s32 %s13, 1
      // Predicated region
      $region13: #{embed_nn_forward.1} parent=11 // pred_check
        %p211 = pneg %p86
      $region14: #{embed_nn_forward.1} parent=11 // pred_check_branch
        %213 = sbr.rel (%p211) target = $region16
      $region15: #{embed_nn_forward.1} parent=11 // pred_region
        _
      $region16: #{embed_nn_forward.1} parent=11 // pred_fallthru
        _
      // Predicated region
      $region17: #{embed_nn_forward.1} parent=11 // pred_check
        %p214 = pneg %p107
      $region18: #{embed_nn_forward.1} parent=11 // pred_check_branch
        %216 = sbr.rel (%p214) target = $region20
      $region19: #{embed_nn_forward.1} parent=11 // pred_region
        _
      $region20: #{embed_nn_forward.1} parent=11 // pred_fallthru
        _
      // Predicated region
      $region21: #{embed_nn_forward.1} parent=11 // pred_check
        %p217 = pneg %p128
      $region22: #{embed_nn_forward.1} parent=11 // pred_check_branch
        %219 = sbr.rel (%p217) target = $region24
      $region23: #{embed_nn_forward.1} parent=11 // pred_region
        _
      $region24: #{embed_nn_forward.1} parent=11 // pred_fallthru
        _
      // Predicated region
      $region25: #{embed_nn_forward.1} parent=11 // pred_check
        %p220 = pneg %p149
      $region26: #{embed_nn_forward.1} parent=11 // pred_check_branch
        %222 = sbr.rel (%p220) target = $region28
      $region27: #{embed_nn_forward.1} parent=11 // pred_region
        _
      $region28: #{embed_nn_forward.1} parent=11 // pred_fallthru
        _
      // Predicated region
      $region29: #{embed_nn_forward.1} parent=11 // pred_check
        %p223 = pneg %p170
      $region30: #{embed_nn_forward.1} parent=11 // pred_check_branch
        %225 = sbr.rel (%p223) target = $region32
      $region31: #{embed_nn_forward.1} parent=11 // pred_region
        _
      $region32: #{embed_nn_forward.1} parent=11 // pred_fallthru
        _
    $region12: #{embed_nn_forward.1} parent=5 // pred_fallthru
      _
    %p226 = scmp.lt.s32.totalorder %s13, 2
    // Predicated region
    $region33: #{embed_nn_forward.1} parent=5 // pred_check
      %p227 = pneg %p226
    $region34: #{embed_nn_forward.1} parent=5 // pred_check_branch
      %229 = sbr.rel (%p227) target = $region36
    $region35: #{embed_nn_forward.1} parent=5 // pred_region
      // Predicated region
      $region37: #{embed_nn_forward.1} parent=35 // pred_check
        %p230 = pneg %p33
      $region38: #{embed_nn_forward.1} parent=35 // pred_check_branch
        %232 = sbr.rel (%p230) target = $region40
      $region39: #{embed_nn_forward.1} parent=35 // pred_region
        %s233 = smul.u32 32, %s13
        %p234 = scmp.lt.s32.totalorder %s233, 63
        %s235 = scalar_select %p234, %s233, 63
        %s236 = smul.addr %s235, 8
        %s237 = scalar_lea.vmem %s0, %s236
        %s238 = smul.u32 32, %s13
      $region40: #{embed_nn_forward.1} parent=35 // pred_fallthru
        _
      // Predicated region
      $region41: #{embed_nn_forward.1} parent=35 // pred_check
        %p239 = pneg %p59
      $region42: #{embed_nn_forward.1} parent=35 // pred_check_branch
        %241 = sbr.rel (%p239) target = $region44
      $region43: #{embed_nn_forward.1} parent=35 // pred_region
        %s242 = smul.u32 32, %s13
        %p243 = scmp.lt.s32.totalorder %s242, 63
        %s244 = scalar_select %p243, %s242, 63
        %s245 = smul.addr %s244, 8
        %s246 = scalar_lea.vmem %s1, %s245
        %s247 = smul.u32 32, %s13
      $region44: #{embed_nn_forward.1} parent=35 // pred_fallthru
        _
    $region36: #{embed_nn_forward.1} parent=5 // pred_fallthru
      _
    %p248 = scmp.le.s32.totalorder 1, %s13
    %p249 = scmp.lt.s32.totalorder %s13, 3
    %p250 = pnand %p248, %p249
    %p251 = pneg %p250
    // Predicated region
    $region45: #{embed_nn_forward.1} parent=5 // pred_check
      _
    $region46: #{embed_nn_forward.1} parent=5 // pred_check_branch
      %253 = sbr.rel (%p250) target = $region48
    $region47: #{embed_nn_forward.1} parent=5 // pred_region
      %s254 = ssub.s32 %s13, 1
      %s255 = smul.u32 32, %s18
      %p256 = scmp.lt.s32.totalorder %s255, 63
      %s257 = scalar_select %p256, %s255, 63
      %s258 = smul.addr %s257, 8
      %s259 = scalar_lea.vmem %s0, %s258
      %p260 = pneg %p39
      %p261 = pneg %p36
      %s262 = smul.u32 32, %s18
      %p263 = scmp.lt.s32.totalorder %s262, 63
      %s264 = scalar_select %p263, %s262, 63
      %s265 = smul.addr %s264, 8
      %s266 = scalar_lea.vmem %s1, %s265
      %p267 = pneg %p65
      %p268 = pneg %p62
      %p269 = pneg %p86
      %p270 = pneg %p83
      %p271 = pneg %p107
      %p272 = pneg %p104
      %p273 = pneg %p128
      %p274 = pneg %p125
      %p275 = pneg %p149
      %p276 = pneg %p146
      %p277 = pneg %p170
      %p278 = pneg %p167
      %p279 = pneg %p196
      %p280 = pneg %p193
      %s281 = smul.u32 32, %s18
      %p282 = scmp.lt.s32.totalorder %s281, 63
      %s283 = scalar_select %p282, %s281, 63
      %s284 = smul.addr %s283, 8
      %s285 = scalar_lea.vmem %s7, %s284
      %s286 = smul.u32 32, %s18
      %p287 = scmp.lt.s32.totalorder %s286, 63
      %s288 = scalar_select %p287, %s286, 63
      %s289 = smul.addr %s288, 8
      %s290 = scalar_lea.vmem %s0, %s289
      %s291 = smul.u32 32, %s18
      %s292 = smul.u32 32, %s18
      %p293 = scmp.lt.s32.totalorder %s292, 63
      %s294 = scalar_select %p293, %s292, 63
      %s295 = smul.addr %s294, 8
      %s296 = scalar_lea.vmem %s1, %s295
      %s297 = smul.u32 32, %s18
      %s298 = smul.u32 32, %s18
      %p299 = scmp.lt.s32.totalorder %s298, 63
      %s300 = scalar_select %p299, %s298, 63
      %s301 = smul.addr %s300, 8
      %s302 = scalar_lea.vmem %s7, %s301
      %s303 = smul.u32 32, %s18
      %v305 = vlaneseq
      %v306 = vand.u32 %v305, 127
      %v307 = vld [vmem:[%s290] sm:$0xff]
      %v308 = vld [vmem:[%s290 + $0x8] sm:$0xff]
      %v309 = vld [vmem:[%s290 + $0x10] sm:$0xff]
      %v310 = vld [vmem:[%s290 + $0x18] sm:$0xff]
      %v311 = vld [vmem:[%s290 + $0x20] sm:$0xff]
      %v312 = vld [vmem:[%s290 + $0x28] sm:$0xff]
      %v313 = vld [vmem:[%s290 + $0x30] sm:$0xff]
      %v314 = vld [vmem:[%s290 + $0x38] sm:$0xff]
      %v315 = vld [vmem:[%s290 + $0x40] sm:$0xff]
      %v316 = vld [vmem:[%s290 + $0x48] sm:$0xff]
      %v317 = vld [vmem:[%s290 + $0x50] sm:$0xff]
      %v318 = vld [vmem:[%s290 + $0x58] sm:$0xff]
      %v319 = vld [vmem:[%s290 + $0x60] sm:$0xff]
      %v320 = vld [vmem:[%s290 + $0x68] sm:$0xff]
      %v321 = vld [vmem:[%s290 + $0x70] sm:$0xff]
      %v322 = vld [vmem:[%s290 + $0x78] sm:$0xff]
      %v323 = vld [vmem:[%s290 + $0x80] sm:$0xff]
      %v324 = vld [vmem:[%s290 + $0x88] sm:$0xff]
      %v325 = vld [vmem:[%s290 + $0x90] sm:$0xff]
      %v326 = vld [vmem:[%s290 + $0x98] sm:$0xff]
      %v327 = vld [vmem:[%s290 + $0xa0] sm:$0xff]
      %v328 = vld [vmem:[%s290 + $0xa8] sm:$0xff]
      %v329 = vld [vmem:[%s290 + $0xb0] sm:$0xff]
      %v330 = vld [vmem:[%s290 + $0xb8] sm:$0xff]
      %v331 = vld [vmem:[%s290 + $0xc0] sm:$0xff]
      %v332 = vld [vmem:[%s290 + $0xc8] sm:$0xff]
      %v333 = vld [vmem:[%s290 + $0xd0] sm:$0xff]
      %v334 = vld [vmem:[%s290 + $0xd8] sm:$0xff]
      %v335 = vld [vmem:[%s290 + $0xe0] sm:$0xff]
      %v336 = vld [vmem:[%s290 + $0xe8] sm:$0xff]
      %v337 = vld [vmem:[%s290 + $0xf0] sm:$0xff]
      %v338 = vld [vmem:[%s290 + $0xf8] sm:$0xff]
      %339 = vset.pattern.permute.xlu0 0
      %340 = vperm.xlu0 %339, %v307
      %v341 = vpop.permute.xlu0 %340
      %342 = vset.pattern.permute.xlu0 0
      %343 = vperm.xlu0 %342, %v308
      %v344 = vpop.permute.xlu0 %343
      %345 = vset.pattern.permute.xlu0 0
      %346 = vperm.xlu0 %345, %v309
      %v347 = vpop.permute.xlu0 %346
      %348 = vset.pattern.permute.xlu0 0
      %349 = vperm.xlu0 %348, %v310
      %v350 = vpop.permute.xlu0 %349
      %351 = vset.pattern.permute.xlu0 0
      %352 = vperm.xlu0 %351, %v311
      %v353 = vpop.permute.xlu0 %352
      %354 = vset.pattern.permute.xlu0 0
      %355 = vperm.xlu0 %354, %v312
      %v356 = vpop.permute.xlu0 %355
      %357 = vset.pattern.permute.xlu0 0
      %358 = vperm.xlu0 %357, %v313
      %v359 = vpop.permute.xlu0 %358
      %360 = vset.pattern.permute.xlu0 0
      %361 = vperm.xlu0 %360, %v314
      %v362 = vpop.permute.xlu0 %361
      %363 = vset.pattern.permute.xlu0 0
      %364 = vperm.xlu0 %363, %v315
      %v365 = vpop.permute.xlu0 %364
      %366 = vset.pattern.permute.xlu0 0
      %367 = vperm.xlu0 %366, %v316
      %v368 = vpop.permute.xlu0 %367
      %369 = vset.pattern.permute.xlu0 0
      %370 = vperm.xlu0 %369, %v317
      %v371 = vpop.permute.xlu0 %370
      %372 = vset.pattern.permute.xlu0 0
      %373 = vperm.xlu0 %372, %v318
      %v374 = vpop.permute.xlu0 %373
      %375 = vset.pattern.permute.xlu0 0
      %376 = vperm.xlu0 %375, %v319
      %v377 = vpop.permute.xlu0 %376
      %378 = vset.pattern.permute.xlu0 0
      %379 = vperm.xlu0 %378, %v320
      %v380 = vpop.permute.xlu0 %379
      %381 = vset.pattern.permute.xlu0 0
      %382 = vperm.xlu0 %381, %v321
      %v383 = vpop.permute.xlu0 %382
      %384 = vset.pattern.permute.xlu0 0
      %385 = vperm.xlu0 %384, %v322
      %v386 = vpop.permute.xlu0 %385
      %387 = vset.pattern.permute.xlu0 0
      %388 = vperm.xlu0 %387, %v323
      %v389 = vpop.permute.xlu0 %388
      %390 = vset.pattern.permute.xlu0 0
      %391 = vperm.xlu0 %390, %v324
      %v392 = vpop.permute.xlu0 %391
      %393 = vset.pattern.permute.xlu0 0
      %394 = vperm.xlu0 %393, %v325
      %v395 = vpop.permute.xlu0 %394
      %396 = vset.pattern.permute.xlu0 0
      %397 = vperm.xlu0 %396, %v326
      %v398 = vpop.permute.xlu0 %397
      %399 = vset.pattern.permute.xlu0 0
      %400 = vperm.xlu0 %399, %v327
      %v401 = vpop.permute.xlu0 %400
      %402 = vset.pattern.permute.xlu0 0
      %403 = vperm.xlu0 %402, %v328
      %v404 = vpop.permute.xlu0 %403
      %405 = vset.pattern.permute.xlu0 0
      %406 = vperm.xlu0 %405, %v329
      %v407 = vpop.permute.xlu0 %406
      %408 = vset.pattern.permute.xlu0 0
      %409 = vperm.xlu0 %408, %v330
      %v410 = vpop.permute.xlu0 %409
      %411 = vset.pattern.permute.xlu0 0
      %412 = vperm.xlu0 %411, %v331
      %v413 = vpop.permute.xlu0 %412
      %414 = vset.pattern.permute.xlu0 0
      %415 = vperm.xlu0 %414, %v332
      %v416 = vpop.permute.xlu0 %415
      %417 = vset.pattern.permute.xlu0 0
      %418 = vperm.xlu0 %417, %v333
      %v419 = vpop.permute.xlu0 %418
      %420 = vset.pattern.permute.xlu0 0
      %421 = vperm.xlu0 %420, %v334
      %v422 = vpop.permute.xlu0 %421
      %423 = vset.pattern.permute.xlu0 0
      %424 = vperm.xlu0 %423, %v335
      %v425 = vpop.permute.xlu0 %424
      %426 = vset.pattern.permute.xlu0 0
      %427 = vperm.xlu0 %426, %v336
      %v428 = vpop.permute.xlu0 %427
      %429 = vset.pattern.permute.xlu0 0
      %430 = vperm.xlu0 %429, %v337
      %v431 = vpop.permute.xlu0 %430
      %432 = vset.pattern.permute.xlu0 0
      %433 = vperm.xlu0 %432, %v338
      %v434 = vpop.permute.xlu0 %433
      %vm435 = vcmp.eq.s32.totalorder %v341, %v306
      %vm436 = vcmp.eq.s32.totalorder %v344, %v306
      %vm437 = vcmp.eq.s32.totalorder %v347, %v306
      %vm438 = vcmp.eq.s32.totalorder %v350, %v306
      %vm439 = vcmp.eq.s32.totalorder %v353, %v306
      %vm440 = vcmp.eq.s32.totalorder %v356, %v306
      %vm441 = vcmp.eq.s32.totalorder %v359, %v306
      %vm442 = vcmp.eq.s32.totalorder %v362, %v306
      %vm443 = vcmp.eq.s32.totalorder %v365, %v306
      %vm444 = vcmp.eq.s32.totalorder %v368, %v306
      %vm445 = vcmp.eq.s32.totalorder %v371, %v306
      %vm446 = vcmp.eq.s32.totalorder %v374, %v306
      %vm447 = vcmp.eq.s32.totalorder %v377, %v306
      %vm448 = vcmp.eq.s32.totalorder %v380, %v306
      %vm449 = vcmp.eq.s32.totalorder %v383, %v306
      %vm450 = vcmp.eq.s32.totalorder %v386, %v306
      %vm451 = vcmp.eq.s32.totalorder %v389, %v306
      %vm452 = vcmp.eq.s32.totalorder %v392, %v306
      %vm453 = vcmp.eq.s32.totalorder %v395, %v306
      %vm454 = vcmp.eq.s32.totalorder %v398, %v306
      %vm455 = vcmp.eq.s32.totalorder %v401, %v306
      %vm456 = vcmp.eq.s32.totalorder %v404, %v306
      %vm457 = vcmp.eq.s32.totalorder %v407, %v306
      %vm458 = vcmp.eq.s32.totalorder %v410, %v306
      %vm459 = vcmp.eq.s32.totalorder %v413, %v306
      %vm460 = vcmp.eq.s32.totalorder %v416, %v306
      %vm461 = vcmp.eq.s32.totalorder %v419, %v306
      %vm462 = vcmp.eq.s32.totalorder %v422, %v306
      %vm463 = vcmp.eq.s32.totalorder %v425, %v306
      %vm464 = vcmp.eq.s32.totalorder %v428, %v306
      %vm465 = vcmp.eq.s32.totalorder %v431, %v306
      %vm466 = vcmp.eq.s32.totalorder %v434, %v306
      %v467 = vadd.s32 %v307, 10
      %v468 = vadd.s32 %v308, 10
      %v469 = vadd.s32 %v309, 10
      %v470 = vadd.s32 %v310, 10
      %v471 = vadd.s32 %v311, 10
      %v472 = vadd.s32 %v312, 10
      %v473 = vadd.s32 %v313, 10
      %v474 = vadd.s32 %v314, 10
      %v475 = vadd.s32 %v315, 10
      %v476 = vadd.s32 %v316, 10
      %v477 = vadd.s32 %v317, 10
      %v478 = vadd.s32 %v318, 10
      %v479 = vadd.s32 %v319, 10
      %v480 = vadd.s32 %v320, 10
      %v481 = vadd.s32 %v321, 10
      %v482 = vadd.s32 %v322, 10
      %v483 = vadd.s32 %v323, 10
      %v484 = vadd.s32 %v324, 10
      %v485 = vadd.s32 %v325, 10
      %v486 = vadd.s32 %v326, 10
      %v487 = vadd.s32 %v327, 10
      %v488 = vadd.s32 %v328, 10
      %v489 = vadd.s32 %v329, 10
      %v490 = vadd.s32 %v330, 10
      %v491 = vadd.s32 %v331, 10
      %v492 = vadd.s32 %v332, 10
      %v493 = vadd.s32 %v333, 10
      %v494 = vadd.s32 %v334, 10
      %v495 = vadd.s32 %v335, 10
      %v496 = vadd.s32 %v336, 10
      %v497 = vadd.s32 %v337, 10
      %v498 = vadd.s32 %v338, 10
      %499 = vset.pattern.permute.xlu0 1
      %500 = vperm.xlu0 %499, %v467
      %v501 = vpop.permute.xlu0 %500
      %502 = vset.pattern.permute.xlu0 1
      %503 = vperm.xlu0 %502, %v468
      %v504 = vpop.permute.xlu0 %503
      %505 = vset.pattern.permute.xlu0 1
      %506 = vperm.xlu0 %505, %v469
      %v507 = vpop.permute.xlu0 %506
      %508 = vset.pattern.permute.xlu0 1
      %509 = vperm.xlu0 %508, %v470
      %v510 = vpop.permute.xlu0 %509
      %511 = vset.pattern.permute.xlu0 1
      %512 = vperm.xlu0 %511, %v471
      %v513 = vpop.permute.xlu0 %512
      %514 = vset.pattern.permute.xlu0 1
      %515 = vperm.xlu0 %514, %v472
      %v516 = vpop.permute.xlu0 %515
      %517 = vset.pattern.permute.xlu0 1
      %518 = vperm.xlu0 %517, %v473
      %v519 = vpop.permute.xlu0 %518
      %520 = vset.pattern.permute.xlu0 1
      %521 = vperm.xlu0 %520, %v474
      %v522 = vpop.permute.xlu0 %521
      %523 = vset.pattern.permute.xlu0 1
      %524 = vperm.xlu0 %523, %v475
      %v525 = vpop.permute.xlu0 %524
      %526 = vset.pattern.permute.xlu0 1
      %527 = vperm.xlu0 %526, %v476
      %v528 = vpop.permute.xlu0 %527
      %529 = vset.pattern.permute.xlu0 1
      %530 = vperm.xlu0 %529, %v477
      %v531 = vpop.permute.xlu0 %530
      %532 = vset.pattern.permute.xlu0 1
      %533 = vperm.xlu0 %532, %v478
      %v534 = vpop.permute.xlu0 %533
      %535 = vset.pattern.permute.xlu0 1
      %536 = vperm.xlu0 %535, %v479
      %v537 = vpop.permute.xlu0 %536
      %538 = vset.pattern.permute.xlu0 1
      %539 = vperm.xlu0 %538, %v480
      %v540 = vpop.permute.xlu0 %539
      %541 = vset.pattern.permute.xlu0 1
      %542 = vperm.xlu0 %541, %v481
      %v543 = vpop.permute.xlu0 %542
      %544 = vset.pattern.permute.xlu0 1
      %545 = vperm.xlu0 %544, %v482
      %v546 = vpop.permute.xlu0 %545
      %547 = vset.pattern.permute.xlu0 1
      %548 = vperm.xlu0 %547, %v483
      %v549 = vpop.permute.xlu0 %548
      %550 = vset.pattern.permute.xlu0 1
      %551 = vperm.xlu0 %550, %v484
      %v552 = vpop.permute.xlu0 %551
      %553 = vset.pattern.permute.xlu0 1
      %554 = vperm.xlu0 %553, %v485
      %v555 = vpop.permute.xlu0 %554
      %556 = vset.pattern.permute.xlu0 1
      %557 = vperm.xlu0 %556, %v486
      %v558 = vpop.permute.xlu0 %557
      %559 = vset.pattern.permute.xlu0 1
      %560 = vperm.xlu0 %559, %v487
      %v561 = vpop.permute.xlu0 %560
      %562 = vset.pattern.permute.xlu0 1
      %563 = vperm.xlu0 %562, %v488
      %v564 = vpop.permute.xlu0 %563
      %565 = vset.pattern.permute.xlu0 1
      %566 = vperm.xlu0 %565, %v489
      %v567 = vpop.permute.xlu0 %566
      %568 = vset.pattern.permute.xlu0 1
      %569 = vperm.xlu0 %568, %v490
      %v570 = vpop.permute.xlu0 %569
      %571 = vset.pattern.permute.xlu0 1
      %572 = vperm.xlu0 %571, %v491
      %v573 = vpop.permute.xlu0 %572
      %574 = vset.pattern.permute.xlu0 1
      %575 = vperm.xlu0 %574, %v492
      %v576 = vpop.permute.xlu0 %575
      %577 = vset.pattern.permute.xlu0 1
      %578 = vperm.xlu0 %577, %v493
      %v579 = vpop.permute.xlu0 %578
      %580 = vset.pattern.permute.xlu0 1
      %581 = vperm.xlu0 %580, %v494
      %v582 = vpop.permute.xlu0 %581
      %583 = vset.pattern.permute.xlu0 1
      %584 = vperm.xlu0 %583, %v495
      %v585 = vpop.permute.xlu0 %584
      %586 = vset.pattern.permute.xlu0 1
      %587 = vperm.xlu0 %586, %v496
      %v588 = vpop.permute.xlu0 %587
      %589 = vset.pattern.permute.xlu0 1
      %590 = vperm.xlu0 %589, %v497
      %v591 = vpop.permute.xlu0 %590
      %592 = vset.pattern.permute.xlu0 1
      %593 = vperm.xlu0 %592, %v498
      %v594 = vpop.permute.xlu0 %593
      %vm595 = vcmp.eq.s32.totalorder %v501, %v306
      %vm596 = vcmp.eq.s32.totalorder %v504, %v306
      %vm597 = vcmp.eq.s32.totalorder %v507, %v306
      %vm598 = vcmp.eq.s32.totalorder %v510, %v306
      %vm599 = vcmp.eq.s32.totalorder %v513, %v306
      %vm600 = vcmp.eq.s32.totalorder %v516, %v306
      %vm601 = vcmp.eq.s32.totalorder %v519, %v306
      %vm602 = vcmp.eq.s32.totalorder %v522, %v306
      %vm603 = vcmp.eq.s32.totalorder %v525, %v306
      %vm604 = vcmp.eq.s32.totalorder %v528, %v306
      %vm605 = vcmp.eq.s32.totalorder %v531, %v306
      %vm606 = vcmp.eq.s32.totalorder %v534, %v306
      %vm607 = vcmp.eq.s32.totalorder %v537, %v306
      %vm608 = vcmp.eq.s32.totalorder %v540, %v306
      %vm609 = vcmp.eq.s32.totalorder %v543, %v306
      %vm610 = vcmp.eq.s32.totalorder %v546, %v306
      %vm611 = vcmp.eq.s32.totalorder %v549, %v306
      %vm612 = vcmp.eq.s32.totalorder %v552, %v306
      %vm613 = vcmp.eq.s32.totalorder %v555, %v306
      %vm614 = vcmp.eq.s32.totalorder %v558, %v306
      %vm615 = vcmp.eq.s32.totalorder %v561, %v306
      %vm616 = vcmp.eq.s32.totalorder %v564, %v306
      %vm617 = vcmp.eq.s32.totalorder %v567, %v306
      %vm618 = vcmp.eq.s32.totalorder %v570, %v306
      %vm619 = vcmp.eq.s32.totalorder %v573, %v306
      %vm620 = vcmp.eq.s32.totalorder %v576, %v306
      %vm621 = vcmp.eq.s32.totalorder %v579, %v306
      %vm622 = vcmp.eq.s32.totalorder %v582, %v306
      %vm623 = vcmp.eq.s32.totalorder %v585, %v306
      %vm624 = vcmp.eq.s32.totalorder %v588, %v306
      %vm625 = vcmp.eq.s32.totalorder %v591, %v306
      %vm626 = vcmp.eq.s32.totalorder %v594, %v306
      %vm627 = vmor %vm435, %vm595
      %vm628 = vmor %vm436, %vm596
      %vm629 = vmor %vm437, %vm597
      %vm630 = vmor %vm438, %vm598
      %vm631 = vmor %vm439, %vm599
      %vm632 = vmor %vm440, %vm600
      %vm633 = vmor %vm441, %vm601
      %vm634 = vmor %vm442, %vm602
      %vm635 = vmor %vm443, %vm603
      %vm636 = vmor %vm444, %vm604
      %vm637 = vmor %vm445, %vm605
      %vm638 = vmor %vm446, %vm606
      %vm639 = vmor %vm447, %vm607
      %vm640 = vmor %vm448, %vm608
      %vm641 = vmor %vm449, %vm609
      %vm642 = vmor %vm450, %vm610
      %vm643 = vmor %vm451, %vm611
      %vm644 = vmor %vm452, %vm612
      %vm645 = vmor %vm453, %vm613
      %vm646 = vmor %vm454, %vm614
      %vm647 = vmor %vm455, %vm615
      %vm648 = vmor %vm456, %vm616
      %vm649 = vmor %vm457, %vm617
      %vm650 = vmor %vm458, %vm618
      %vm651 = vmor %vm459, %vm619
      %vm652 = vmor %vm460, %vm620
      %vm653 = vmor %vm461, %vm621
      %vm654 = vmor %vm462, %vm622
      %vm655 = vmor %vm463, %vm623
      %vm656 = vmor %vm464, %vm624
      %vm657 = vmor %vm465, %vm625
      %vm658 = vmor %vm466, %vm626
      %v659 = vadd.s32 %v307, 17
      %v660 = vadd.s32 %v308, 17
      %v661 = vadd.s32 %v309, 17
      %v662 = vadd.s32 %v310, 17
      %v663 = vadd.s32 %v311, 17
      %v664 = vadd.s32 %v312, 17
      %v665 = vadd.s32 %v313, 17
      %v666 = vadd.s32 %v314, 17
      %v667 = vadd.s32 %v315, 17
      %v668 = vadd.s32 %v316, 17
      %v669 = vadd.s32 %v317, 17
      %v670 = vadd.s32 %v318, 17
      %v671 = vadd.s32 %v319, 17
      %v672 = vadd.s32 %v320, 17
      %v673 = vadd.s32 %v321, 17
      %v674 = vadd.s32 %v322, 17
      %v675 = vadd.s32 %v323, 17
      %v676 = vadd.s32 %v324, 17
      %v677 = vadd.s32 %v325, 17
      %v678 = vadd.s32 %v326, 17
      %v679 = vadd.s32 %v327, 17
      %v680 = vadd.s32 %v328, 17
      %v681 = vadd.s32 %v329, 17
      %v682 = vadd.s32 %v330, 17
      %v683 = vadd.s32 %v331, 17
      %v684 = vadd.s32 %v332, 17
      %v685 = vadd.s32 %v333, 17
      %v686 = vadd.s32 %v334, 17
      %v687 = vadd.s32 %v335, 17
      %v688 = vadd.s32 %v336, 17
      %v689 = vadd.s32 %v337, 17
      %v690 = vadd.s32 %v338, 17
      %691 = vset.pattern.permute.xlu0 2
      %692 = vperm.xlu0 %691, %v659
      %v693 = vpop.permute.xlu0 %692
      %694 = vset.pattern.permute.xlu0 2
      %695 = vperm.xlu0 %694, %v660
      %v696 = vpop.permute.xlu0 %695
      %697 = vset.pattern.permute.xlu0 2
      %698 = vperm.xlu0 %697, %v661
      %v699 = vpop.permute.xlu0 %698
      %700 = vset.pattern.permute.xlu0 2
      %701 = vperm.xlu0 %700, %v662
      %v702 = vpop.permute.xlu0 %701
      %703 = vset.pattern.permute.xlu0 2
      %704 = vperm.xlu0 %703, %v663
      %v705 = vpop.permute.xlu0 %704
      %706 = vset.pattern.permute.xlu0 2
      %707 = vperm.xlu0 %706, %v664
      %v708 = vpop.permute.xlu0 %707
      %709 = vset.pattern.permute.xlu0 2
      %710 = vperm.xlu0 %709, %v665
      %v711 = vpop.permute.xlu0 %710
      %712 = vset.pattern.permute.xlu0 2
      %713 = vperm.xlu0 %712, %v666
      %v714 = vpop.permute.xlu0 %713
      %715 = vset.pattern.permute.xlu0 2
      %716 = vperm.xlu0 %715, %v667
      %v717 = vpop.permute.xlu0 %716
      %718 = vset.pattern.permute.xlu0 2
      %719 = vperm.xlu0 %718, %v668
      %v720 = vpop.permute.xlu0 %719
      %721 = vset.pattern.permute.xlu0 2
      %722 = vperm.xlu0 %721, %v669
      %v723 = vpop.permute.xlu0 %722
      %724 = vset.pattern.permute.xlu0 2
      %725 = vperm.xlu0 %724, %v670
      %v726 = vpop.permute.xlu0 %725
      %727 = vset.pattern.permute.xlu0 2
      %728 = vperm.xlu0 %727, %v671
      %v729 = vpop.permute.xlu0 %728
      %730 = vset.pattern.permute.xlu0 2
      %731 = vperm.xlu0 %730, %v672
      %v732 = vpop.permute.xlu0 %731
      %733 = vset.pattern.permute.xlu0 2
      %734 = vperm.xlu0 %733, %v673
      %v735 = vpop.permute.xlu0 %734
      %736 = vset.pattern.permute.xlu0 2
      %737 = vperm.xlu0 %736, %v674
      %v738 = vpop.permute.xlu0 %737
      %739 = vset.pattern.permute.xlu0 2
      %740 = vperm.xlu0 %739, %v675
      %v741 = vpop.permute.xlu0 %740
      %742 = vset.pattern.permute.xlu0 2
      %743 = vperm.xlu0 %742, %v676
      %v744 = vpop.permute.xlu0 %743
      %745 = vset.pattern.permute.xlu0 2
      %746 = vperm.xlu0 %745, %v677
      %v747 = vpop.permute.xlu0 %746
      %748 = vset.pattern.permute.xlu0 2
      %749 = vperm.xlu0 %748, %v678
      %v750 = vpop.permute.xlu0 %749
      %751 = vset.pattern.permute.xlu0 2
      %752 = vperm.xlu0 %751, %v679
      %v753 = vpop.permute.xlu0 %752
      %754 = vset.pattern.permute.xlu0 2
      %755 = vperm.xlu0 %754, %v680
      %v756 = vpop.permute.xlu0 %755
      %757 = vset.pattern.permute.xlu0 2
      %758 = vperm.xlu0 %757, %v681
      %v759 = vpop.permute.xlu0 %758
      %760 = vset.pattern.permute.xlu0 2
      %761 = vperm.xlu0 %760, %v682
      %v762 = vpop.permute.xlu0 %761
      %763 = vset.pattern.permute.xlu0 2
      %764 = vperm.xlu0 %763, %v683
      %v765 = vpop.permute.xlu0 %764
      %766 = vset.pattern.permute.xlu0 2
      %767 = vperm.xlu0 %766, %v684
      %v768 = vpop.permute.xlu0 %767
      %769 = vset.pattern.permute.xlu0 2
      %770 = vperm.xlu0 %769, %v685
      %v771 = vpop.permute.xlu0 %770
      %772 = vset.pattern.permute.xlu0 2
      %773 = vperm.xlu0 %772, %v686
      %v774 = vpop.permute.xlu0 %773
      %775 = vset.pattern.permute.xlu0 2
      %776 = vperm.xlu0 %775, %v687
      %v777 = vpop.permute.xlu0 %776
      %778 = vset.pattern.permute.xlu0 2
      %779 = vperm.xlu0 %778, %v688
      %v780 = vpop.permute.xlu0 %779
      %781 = vset.pattern.permute.xlu0 2
      %782 = vperm.xlu0 %781, %v689
      %v783 = vpop.permute.xlu0 %782
      %784 = vset.pattern.permute.xlu0 2
      %785 = vperm.xlu0 %784, %v690
      %v786 = vpop.permute.xlu0 %785
      %vm787 = vcmp.eq.s32.totalorder %v693, %v306
      %vm788 = vcmp.eq.s32.totalorder %v696, %v306
      %vm789 = vcmp.eq.s32.totalorder %v699, %v306
      %vm790 = vcmp.eq.s32.totalorder %v702, %v306
      %vm791 = vcmp.eq.s32.totalorder %v705, %v306
      %vm792 = vcmp.eq.s32.totalorder %v708, %v306
      %vm793 = vcmp.eq.s32.totalorder %v711, %v306
      %vm794 = vcmp.eq.s32.totalorder %v714, %v306
      %vm795 = vcmp.eq.s32.totalorder %v717, %v306
      %vm796 = vcmp.eq.s32.totalorder %v720, %v306
      %vm797 = vcmp.eq.s32.totalorder %v723, %v306
      %vm798 = vcmp.eq.s32.totalorder %v726, %v306
      %vm799 = vcmp.eq.s32.totalorder %v729, %v306
      %vm800 = vcmp.eq.s32.totalorder %v732, %v306
      %vm801 = vcmp.eq.s32.totalorder %v735, %v306
      %vm802 = vcmp.eq.s32.totalorder %v738, %v306
      %vm803 = vcmp.eq.s32.totalorder %v741, %v306
      %vm804 = vcmp.eq.s32.totalorder %v744, %v306
      %vm805 = vcmp.eq.s32.totalorder %v747, %v306
      %vm806 = vcmp.eq.s32.totalorder %v750, %v306
      %vm807 = vcmp.eq.s32.totalorder %v753, %v306
      %vm808 = vcmp.eq.s32.totalorder %v756, %v306
      %vm809 = vcmp.eq.s32.totalorder %v759, %v306
      %vm810 = vcmp.eq.s32.totalorder %v762, %v306
      %vm811 = vcmp.eq.s32.totalorder %v765, %v306
      %vm812 = vcmp.eq.s32.totalorder %v768, %v306
      %vm813 = vcmp.eq.s32.totalorder %v771, %v306
      %vm814 = vcmp.eq.s32.totalorder %v774, %v306
      %vm815 = vcmp.eq.s32.totalorder %v777, %v306
      %vm816 = vcmp.eq.s32.totalorder %v780, %v306
      %vm817 = vcmp.eq.s32.totalorder %v783, %v306
      %vm818 = vcmp.eq.s32.totalorder %v786, %v306
      %vm819 = vmor %vm627, %vm787
      %vm820 = vmor %vm628, %vm788
      %vm821 = vmor %vm629, %vm789
      %vm822 = vmor %vm630, %vm790
      %vm823 = vmor %vm631, %vm791
      %vm824 = vmor %vm632, %vm792
      %vm825 = vmor %vm633, %vm793
      %vm826 = vmor %vm634, %vm794
      %vm827 = vmor %vm635, %vm795
      %vm828 = vmor %vm636, %vm796
      %vm829 = vmor %vm637, %vm797
      %vm830 = vmor %vm638, %vm798
      %vm831 = vmor %vm639, %vm799
      %vm832 = vmor %vm640, %vm800
      %vm833 = vmor %vm641, %vm801
      %vm834 = vmor %vm642, %vm802
      %vm835 = vmor %vm643, %vm803
      %vm836 = vmor %vm644, %vm804
      %vm837 = vmor %vm645, %vm805
      %vm838 = vmor %vm646, %vm806
      %vm839 = vmor %vm647, %vm807
      %vm840 = vmor %vm648, %vm808
      %vm841 = vmor %vm649, %vm809
      %vm842 = vmor %vm650, %vm810
      %vm843 = vmor %vm651, %vm811
      %vm844 = vmor %vm652, %vm812
      %vm845 = vmor %vm653, %vm813
      %vm846 = vmor %vm654, %vm814
      %vm847 = vmor %vm655, %vm815
      %vm848 = vmor %vm656, %vm816
      %vm849 = vmor %vm657, %vm817
      %vm850 = vmor %vm658, %vm818
      %v851 = vsel %vm819, 1, 0
      %v852 = vsel %vm820, 1, 0
      %v853 = vsel %vm821, 1, 0
      %v854 = vsel %vm822, 1, 0
      %v855 = vsel %vm823, 1, 0
      %v856 = vsel %vm824, 1, 0
      %v857 = vsel %vm825, 1, 0
      %v858 = vsel %vm826, 1, 0
      %v859 = vsel %vm827, 1, 0
      %v860 = vsel %vm828, 1, 0
      %v861 = vsel %vm829, 1, 0
      %v862 = vsel %vm830, 1, 0
      %v863 = vsel %vm831, 1, 0
      %v864 = vsel %vm832, 1, 0
      %v865 = vsel %vm833, 1, 0
      %v866 = vsel %vm834, 1, 0
      %v867 = vsel %vm835, 1, 0
      %v868 = vsel %vm836, 1, 0
      %v869 = vsel %vm837, 1, 0
      %v870 = vsel %vm838, 1, 0
      %v871 = vsel %vm839, 1, 0
      %v872 = vsel %vm840, 1, 0
      %v873 = vsel %vm841, 1, 0
      %v874 = vsel %vm842, 1, 0
      %v875 = vsel %vm843, 1, 0
      %v876 = vsel %vm844, 1, 0
      %v877 = vsel %vm845, 1, 0
      %v878 = vsel %vm846, 1, 0
      %v879 = vsel %vm847, 1, 0
      %v880 = vsel %vm848, 1, 0
      %v881 = vsel %vm849, 1, 0
      %v882 = vsel %vm850, 1, 0
      %v883 = vcvt.s32.f32 %v851
      %v884 = vcvt.s32.f32 %v852
      %v885 = vcvt.s32.f32 %v853
      %v886 = vcvt.s32.f32 %v854
      %v887 = vcvt.s32.f32 %v855
      %v888 = vcvt.s32.f32 %v856
      %v889 = vcvt.s32.f32 %v857
      %v890 = vcvt.s32.f32 %v858
      %v891 = vcvt.s32.f32 %v859
      %v892 = vcvt.s32.f32 %v860
      %v893 = vcvt.s32.f32 %v861
      %v894 = vcvt.s32.f32 %v862
      %v895 = vcvt.s32.f32 %v863
      %v896 = vcvt.s32.f32 %v864
      %v897 = vcvt.s32.f32 %v865
      %v898 = vcvt.s32.f32 %v866
      %v899 = vcvt.s32.f32 %v867
      %v900 = vcvt.s32.f32 %v868
      %v901 = vcvt.s32.f32 %v869
      %v902 = vcvt.s32.f32 %v870
      %v903 = vcvt.s32.f32 %v871
      %v904 = vcvt.s32.f32 %v872
      %v905 = vcvt.s32.f32 %v873
      %v906 = vcvt.s32.f32 %v874
      %v907 = vcvt.s32.f32 %v875
      %v908 = vcvt.s32.f32 %v876
      %v909 = vcvt.s32.f32 %v877
      %v910 = vcvt.s32.f32 %v878
      %v911 = vcvt.s32.f32 %v879
      %v912 = vcvt.s32.f32 %v880
      %v913 = vcvt.s32.f32 %v881
      %v914 = vcvt.s32.f32 %v882
      %v915 = vpack.c.bf16 %v884, %v883
      %v916 = vpack.c.bf16 %v886, %v885
      %v917 = vpack.c.bf16 %v888, %v887
      %v918 = vpack.c.bf16 %v890, %v889
      %v919 = vpack.c.bf16 %v892, %v891
      %v920 = vpack.c.bf16 %v894, %v893
      %v921 = vpack.c.bf16 %v896, %v895
      %v922 = vpack.c.bf16 %v898, %v897
      %v923 = vpack.c.bf16 %v900, %v899
      %v924 = vpack.c.bf16 %v902, %v901
      %v925 = vpack.c.bf16 %v904, %v903
      %v926 = vpack.c.bf16 %v906, %v905
      %v927 = vpack.c.bf16 %v908, %v907
      %v928 = vpack.c.bf16 %v910, %v909
      %v929 = vpack.c.bf16 %v912, %v911
      %v930 = vpack.c.bf16 %v914, %v913
      %v931 = vld [vmem:[%s2] sm:$0xf]
      %v932 = vld [vmem:[%s2 + $0x4] sm:$0xf]
      %v933 = vld [vmem:[%s2 + $0x8] sm:$0x7]
      %v934 = vld [vmem:[%s296] sm:$0xff]
      %v935 = vld [vmem:[%s296 + $0x8] sm:$0xff]
      %v936 = vld [vmem:[%s296 + $0x10] sm:$0xff]
      %v937 = vld [vmem:[%s296 + $0x18] sm:$0xff]
      %v938 = vld [vmem:[%s296 + $0x20] sm:$0xff]
      %v939 = vld [vmem:[%s296 + $0x28] sm:$0xff]
      %v940 = vld [vmem:[%s296 + $0x30] sm:$0xff]
      %v941 = vld [vmem:[%s296 + $0x38] sm:$0xff]
      %v942 = vld [vmem:[%s296 + $0x40] sm:$0xff]
      %v943 = vld [vmem:[%s296 + $0x48] sm:$0xff]
      %v944 = vld [vmem:[%s296 + $0x50] sm:$0xff]
      %v945 = vld [vmem:[%s296 + $0x58] sm:$0xff]
      %v946 = vld [vmem:[%s296 + $0x60] sm:$0xff]
      %v947 = vld [vmem:[%s296 + $0x68] sm:$0xff]
      %v948 = vld [vmem:[%s296 + $0x70] sm:$0xff]
      %v949 = vld [vmem:[%s296 + $0x78] sm:$0xff]
      %v950 = vld [vmem:[%s296 + $0x80] sm:$0xff]
      %v951 = vld [vmem:[%s296 + $0x88] sm:$0xff]
      %v952 = vld [vmem:[%s296 + $0x90] sm:$0xff]
      %v953 = vld [vmem:[%s296 + $0x98] sm:$0xff]
      %v954 = vld [vmem:[%s296 + $0xa0] sm:$0xff]
      %v955 = vld [vmem:[%s296 + $0xa8] sm:$0xff]
      %v956 = vld [vmem:[%s296 + $0xb0] sm:$0xff]
      %v957 = vld [vmem:[%s296 + $0xb8] sm:$0xff]
      %v958 = vld [vmem:[%s296 + $0xc0] sm:$0xff]
      %v959 = vld [vmem:[%s296 + $0xc8] sm:$0xff]
      %v960 = vld [vmem:[%s296 + $0xd0] sm:$0xff]
      %v961 = vld [vmem:[%s296 + $0xd8] sm:$0xff]
      %v962 = vld [vmem:[%s296 + $0xe0] sm:$0xff]
      %v963 = vld [vmem:[%s296 + $0xe8] sm:$0xff]
      %v964 = vld [vmem:[%s296 + $0xf0] sm:$0xff]
      %v965 = vld [vmem:[%s296 + $0xf8] sm:$0xff]
      %v966 = vpack.c.bf16 %v935, %v934
      %v967 = vpack.c.bf16 %v937, %v936
      %v968 = vpack.c.bf16 %v939, %v938
      %v969 = vpack.c.bf16 %v941, %v940
      %v970 = vpack.c.bf16 %v943, %v942
      %v971 = vpack.c.bf16 %v945, %v944
      %v972 = vpack.c.bf16 %v947, %v946
      %v973 = vpack.c.bf16 %v949, %v948
      %v974 = vpack.c.bf16 %v951, %v950
      %v975 = vpack.c.bf16 %v953, %v952
      %v976 = vpack.c.bf16 %v955, %v954
      %v977 = vpack.c.bf16 %v957, %v956
      %v978 = vpack.c.bf16 %v959, %v958
      %v979 = vpack.c.bf16 %v961, %v960
      %v980 = vpack.c.bf16 %v963, %v962
      %v981 = vpack.c.bf16 %v965, %v964
      %v982 = vld [vmem:[%s3] sm:$0xf]
      %v983 = vld [vmem:[%s3 + $0x4] sm:$0xf]
      %v986 = vunpack.c.l.b16 %v982
      %v987 = vunpack.c.l.b16 %v983
      %v988 = vpack.c.b16 %v987, %v986
      %vm990 = vcmask 130048
      %v992 = vsel %vm990, %v966, 0
      %v995 = vsel %vm990, %v967, 0
      %v998 = vsel %vm990, %v968, 0
      %v1001 = vsel %vm990, %v969, 0
      %v1004 = vsel %vm990, %v970, 0
      %v1007 = vsel %vm990, %v971, 0
      %v1010 = vsel %vm990, %v972, 0
      %v1013 = vsel %vm990, %v973, 0
      %v1016 = vsel %vm990, %v974, 0
      %v1019 = vsel %vm990, %v975, 0
      %v1022 = vsel %vm990, %v976, 0
      %v1025 = vsel %vm990, %v977, 0
      %v1028 = vsel %vm990, %v978, 0
      %v1031 = vsel %vm990, %v979, 0
      %v1034 = vsel %vm990, %v980, 0
      %v1037 = vsel %vm990, %v981, 0
      %1039 = vmatprep.subr.bf16.mxu0 0
      %1040 = vmatpush1.bf16.msra.mxu0 0
      %1041 = vmatprep.subr.bf16.mxu0 0
      %1042 = vmatpush1.bf16.msra.mxu0 0
      %1043 = vmatprep.subr.bf16.mxu0 0
      %1044 = vmatpush1.bf16.msra.mxu0 0
      %1045 = vmatprep.subr.bf16.mxu0 0
      %1046 = vmatpush1.bf16.msra.mxu0 0
      %1047 = vmatprep.subr.bf16.mxu0 0
      %1048 = vmatpush1.bf16.msra.mxu0 0
      %1049 = vmatprep.subr.bf16.mxu0 0
      %1050 = vmatpush1.bf16.msra.mxu0 0
      %1051 = vmatprep.subr.bf16.mxu0 0
      %1052 = vmatpush1.bf16.msra.mxu0 0
      %1053 = vmatprep.subr.bf16.mxu0 0
      %1054 = vmatpush1.bf16.msra.mxu0 %v988
      %1055 = vmatprep.subr.bf16.mxu0 0
      %1056 = vmatpush2.bf16.msra.mxu0 0
      %1057 = vmatprep.subr.bf16.mxu0 0
      %1058 = vmatpush2.bf16.msra.mxu0 0
      %1059 = vmatprep.subr.bf16.mxu0 0
      %1060 = vmatpush2.bf16.msra.mxu0 0
      %1061 = vmatprep.subr.bf16.mxu0 0
      %1062 = vmatpush2.bf16.msra.mxu0 0
      %1063 = vmatprep.subr.bf16.mxu0 0
      %1064 = vmatpush2.bf16.msra.mxu0 0
      %1065 = vmatprep.subr.bf16.mxu0 0
      %1066 = vmatpush2.bf16.msra.mxu0 0
      %1067 = vmatprep.subr.bf16.mxu0 0
      %1068 = vmatpush2.bf16.msra.mxu0 0
      %1069 = vmatprep.subr.bf16.mxu0 0
      %1070 = vmatpush2.bf16.msra.mxu0 0
      %1071 = vmatprep.mubr.bf16.mxu0 0
      %1072 = vmatmul.mubr.bf16.gmra.mxu0 %v992
      %v1073 = vpop.f32.mrf.mxu0
      %v1074 = vadd.f32 0.0, %v1073
      %v1075 = vpop.f32.mrf.mxu0
      %v1076 = vpop.f32.mrf.mxu0
      %v1077 = vadd.f32 0.0, %v1076
      %v1078 = vpop.f32.mrf.mxu0
      %1079 = vmatprep.mubr.bf16.mxu0 0
      %1080 = vmatmul.mubr.bf16.gmra.mxu0 %v995
      %v1081 = vpop.f32.mrf.mxu0
      %v1082 = vadd.f32 0.0, %v1081
      %v1083 = vpop.f32.mrf.mxu0
      %v1084 = vpop.f32.mrf.mxu0
      %v1085 = vadd.f32 0.0, %v1084
      %v1086 = vpop.f32.mrf.mxu0
      %1087 = vmatprep.mubr.bf16.mxu0 0
      %1088 = vmatmul.mubr.bf16.gmra.mxu0 %v998
      %v1089 = vpop.f32.mrf.mxu0
      %v1090 = vadd.f32 0.0, %v1089
      %v1091 = vpop.f32.mrf.mxu0
      %v1092 = vpop.f32.mrf.mxu0
      %v1093 = vadd.f32 0.0, %v1092
      %v1094 = vpop.f32.mrf.mxu0
      %1095 = vmatprep.mubr.bf16.mxu0 0
      %1096 = vmatmul.mubr.bf16.gmra.mxu0 %v1001
      %v1097 = vpop.f32.mrf.mxu0
      %v1098 = vadd.f32 0.0, %v1097
      %v1099 = vpop.f32.mrf.mxu0
      %v1100 = vpop.f32.mrf.mxu0
      %v1101 = vadd.f32 0.0, %v1100
      %v1102 = vpop.f32.mrf.mxu0
      %1103 = vmatprep.mubr.bf16.mxu0 0
      %1104 = vmatmul.mubr.bf16.gmra.mxu0 %v1004
      %v1105 = vpop.f32.mrf.mxu0
      %v1106 = vadd.f32 0.0, %v1105
      %v1107 = vpop.f32.mrf.mxu0
      %v1108 = vpop.f32.mrf.mxu0
      %v1109 = vadd.f32 0.0, %v1108
      %v1110 = vpop.f32.mrf.mxu0
      %1111 = vmatprep.mubr.bf16.mxu0 0
      %1112 = vmatmul.mubr.bf16.gmra.mxu0 %v1007
      %v1113 = vpop.f32.mrf.mxu0
      %v1114 = vadd.f32 0.0, %v1113
      %v1115 = vpop.f32.mrf.mxu0
      %v1116 = vpop.f32.mrf.mxu0
      %v1117 = vadd.f32 0.0, %v1116
      %v1118 = vpop.f32.mrf.mxu0
      %1119 = vmatprep.mubr.bf16.mxu0 0
      %1120 = vmatmul.mubr.bf16.gmra.mxu0 %v1010
      %v1121 = vpop.f32.mrf.mxu0
      %v1122 = vadd.f32 0.0, %v1121
      %v1123 = vpop.f32.mrf.mxu0
      %v1124 = vpop.f32.mrf.mxu0
      %v1125 = vadd.f32 0.0, %v1124
      %v1126 = vpop.f32.mrf.mxu0
      %1127 = vmatprep.mubr.bf16.mxu0 0
      %1128 = vmatmul.mubr.bf16.gmra.mxu0 %v1013
      %v1129 = vpop.f32.mrf.mxu0
      %v1130 = vadd.f32 0.0, %v1129
      %v1131 = vpop.f32.mrf.mxu0
      %v1132 = vpop.f32.mrf.mxu0
      %v1133 = vadd.f32 0.0, %v1132
      %v1134 = vpop.f32.mrf.mxu0
      %1135 = vmatprep.mubr.bf16.mxu0 0
      %1136 = vmatmul.mubr.bf16.gmra.mxu0 %v1016
      %v1137 = vpop.f32.mrf.mxu0
      %v1138 = vadd.f32 0.0, %v1137
      %v1139 = vpop.f32.mrf.mxu0
      %v1140 = vpop.f32.mrf.mxu0
      %v1141 = vadd.f32 0.0, %v1140
      %v1142 = vpop.f32.mrf.mxu0
      %1143 = vmatprep.mubr.bf16.mxu0 0
      %1144 = vmatmul.mubr.bf16.gmra.mxu0 %v1019
      %v1145 = vpop.f32.mrf.mxu0
      %v1146 = vadd.f32 0.0, %v1145
      %v1147 = vpop.f32.mrf.mxu0
      %v1148 = vpop.f32.mrf.mxu0
      %v1149 = vadd.f32 0.0, %v1148
      %v1150 = vpop.f32.mrf.mxu0
      %1151 = vmatprep.mubr.bf16.mxu0 0
      %1152 = vmatmul.mubr.bf16.gmra.mxu0 %v1022
      %v1153 = vpop.f32.mrf.mxu0
      %v1154 = vadd.f32 0.0, %v1153
      %v1155 = vpop.f32.mrf.mxu0
      %v1156 = vpop.f32.mrf.mxu0
      %v1157 = vadd.f32 0.0, %v1156
      %v1158 = vpop.f32.mrf.mxu0
      %1159 = vmatprep.mubr.bf16.mxu0 0
      %1160 = vmatmul.mubr.bf16.gmra.mxu0 %v1025
      %v1161 = vpop.f32.mrf.mxu0
      %v1162 = vadd.f32 0.0, %v1161
      %v1163 = vpop.f32.mrf.mxu0
      %v1164 = vpop.f32.mrf.mxu0
      %v1165 = vadd.f32 0.0, %v1164
      %v1166 = vpop.f32.mrf.mxu0
      %1167 = vmatprep.mubr.bf16.mxu0 0
      %1168 = vmatmul.mubr.bf16.gmra.mxu0 %v1028
      %v1169 = vpop.f32.mrf.mxu0
      %v1170 = vadd.f32 0.0, %v1169
      %v1171 = vpop.f32.mrf.mxu0
      %v1172 = vpop.f32.mrf.mxu0
      %v1173 = vadd.f32 0.0, %v1172
      %v1174 = vpop.f32.mrf.mxu0
      %1175 = vmatprep.mubr.bf16.mxu0 0
      %1176 = vmatmul.mubr.bf16.gmra.mxu0 %v1031
      %v1177 = vpop.f32.mrf.mxu0
      %v1178 = vadd.f32 0.0, %v1177
      %v1179 = vpop.f32.mrf.mxu0
      %v1180 = vpop.f32.mrf.mxu0
      %v1181 = vadd.f32 0.0, %v1180
      %v1182 = vpop.f32.mrf.mxu0
      %1183 = vmatprep.mubr.bf16.mxu0 0
      %1184 = vmatmul.mubr.bf16.gmra.mxu0 %v1034
      %v1185 = vpop.f32.mrf.mxu0
      %v1186 = vadd.f32 0.0, %v1185
      %v1187 = vpop.f32.mrf.mxu0
      %v1188 = vpop.f32.mrf.mxu0
      %v1189 = vadd.f32 0.0, %v1188
      %v1190 = vpop.f32.mrf.mxu0
      %1191 = vmatprep.mubr.bf16.mxu0 0
      %1192 = vmatmul.mubr.bf16.gmra.mxu0 %v1037
      %v1193 = vpop.f32.mrf.mxu0
      %v1194 = vadd.f32 0.0, %v1193
      %v1195 = vpop.f32.mrf.mxu0
      %v1196 = vpop.f32.mrf.mxu0
      %v1197 = vadd.f32 0.0, %v1196
      %v1198 = vpop.f32.mrf.mxu0
      %1199 = vdwg.mxu0
      %v1203 = vunpack.c.l.b16 %v931
      %v1204 = vunpack.c.l.b16 %v932
      %v1205 = vunpack.c.l.b16 %v933
      %v1206 = vpack.c.b16 %v1204, %v1203
      %v1207 = vpack.c.b16 %v1205, %v1205
      %vm1209 = vcmask 179200
      %v1211 = vsel %vm1209, %v915, 0
      %v1214 = vsel %vm1209, %v916, 0
      %v1217 = vsel %vm1209, %v917, 0
      %v1220 = vsel %vm1209, %v918, 0
      %v1223 = vsel %vm1209, %v919, 0
      %v1226 = vsel %vm1209, %v920, 0
      %v1229 = vsel %vm1209, %v921, 0
      %v1232 = vsel %vm1209, %v922, 0
      %v1235 = vsel %vm1209, %v923, 0
      %v1238 = vsel %vm1209, %v924, 0
      %v1241 = vsel %vm1209, %v925, 0
      %v1244 = vsel %vm1209, %v926, 0
      %v1247 = vsel %vm1209, %v927, 0
      %v1250 = vsel %vm1209, %v928, 0
      %v1253 = vsel %vm1209, %v929, 0
      %v1256 = vsel %vm1209, %v930, 0
      %vm1258 = vcmask 1042432
      %v1260 = vsel %vm1258, %v1207, 0
      %1262 = vmatprep.subr.bf16.mxu0 0
      %1263 = vmatpush1.bf16.msra.mxu0 0
      %1264 = vmatprep.subr.bf16.mxu0 0
      %1265 = vmatpush1.bf16.msra.mxu0 0
      %1266 = vmatprep.subr.bf16.mxu0 0
      %1267 = vmatpush1.bf16.msra.mxu0 0
      %1268 = vmatprep.subr.bf16.mxu0 0
      %1269 = vmatpush1.bf16.msra.mxu0 0
      %1270 = vmatprep.subr.bf16.mxu0 0
      %1271 = vmatpush1.bf16.msra.mxu0 0
      %1272 = vmatprep.subr.bf16.mxu0 0
      %1273 = vmatpush1.bf16.msra.mxu0 0
      %1274 = vmatprep.subr.bf16.mxu0 0
      %1275 = vmatpush1.bf16.msra.mxu0 %v1260
      %1276 = vmatprep.subr.bf16.mxu0 0
      %1277 = vmatpush1.bf16.msra.mxu0 %v1206
      %1278 = vmatprep.subr.bf16.mxu0 0
      %1279 = vmatpush2.bf16.msra.mxu0 0
      %1280 = vmatprep.subr.bf16.mxu0 0
      %1281 = vmatpush2.bf16.msra.mxu0 0
      %1282 = vmatprep.subr.bf16.mxu0 0
      %1283 = vmatpush2.bf16.msra.mxu0 0
      %1284 = vmatprep.subr.bf16.mxu0 0
      %1285 = vmatpush2.bf16.msra.mxu0 0
      %1286 = vmatprep.subr.bf16.mxu0 0
      %1287 = vmatpush2.bf16.msra.mxu0 0
      %1288 = vmatprep.subr.bf16.mxu0 0
      %1289 = vmatpush2.bf16.msra.mxu0 0
      %1290 = vmatprep.subr.bf16.mxu0 0
      %1291 = vmatpush2.bf16.msra.mxu0 0
      %1292 = vmatprep.subr.bf16.mxu0 0
      %1293 = vmatpush2.bf16.msra.mxu0 0
      %1294 = vmatprep.mubr.bf16.mxu0 0
      %1295 = vmatmul.mubr.bf16.gmra.mxu0 %v1211
      %v1296 = vpop.f32.mrf.mxu0
      %v1297 = vadd.f32 %v1074, %v1296
      %v1298 = vpop.f32.mrf.mxu0
      %v1299 = vpop.f32.mrf.mxu0
      %v1300 = vadd.f32 %v1077, %v1299
      %v1301 = vpop.f32.mrf.mxu0
      %1302 = vmatprep.mubr.bf16.mxu0 0
      %1303 = vmatmul.mubr.bf16.gmra.mxu0 %v1214
      %v1304 = vpop.f32.mrf.mxu0
      %v1305 = vadd.f32 %v1082, %v1304
      %v1306 = vpop.f32.mrf.mxu0
      %v1307 = vpop.f32.mrf.mxu0
      %v1308 = vadd.f32 %v1085, %v1307
      %v1309 = vpop.f32.mrf.mxu0
      %1310 = vmatprep.mubr.bf16.mxu0 0
      %1311 = vmatmul.mubr.bf16.gmra.mxu0 %v1217
      %v1312 = vpop.f32.mrf.mxu0
      %v1313 = vadd.f32 %v1090, %v1312
      %v1314 = vpop.f32.mrf.mxu0
      %v1315 = vpop.f32.mrf.mxu0
      %v1316 = vadd.f32 %v1093, %v1315
      %v1317 = vpop.f32.mrf.mxu0
      %1318 = vmatprep.mubr.bf16.mxu0 0
      %1319 = vmatmul.mubr.bf16.gmra.mxu0 %v1220
      %v1320 = vpop.f32.mrf.mxu0
      %v1321 = vadd.f32 %v1098, %v1320
      %v1322 = vpop.f32.mrf.mxu0
      %v1323 = vpop.f32.mrf.mxu0
      %v1324 = vadd.f32 %v1101, %v1323
      %v1325 = vpop.f32.mrf.mxu0
      %1326 = vmatprep.mubr.bf16.mxu0 0
      %1327 = vmatmul.mubr.bf16.gmra.mxu0 %v1223
      %v1328 = vpop.f32.mrf.mxu0
      %v1329 = vadd.f32 %v1106, %v1328
      %v1330 = vpop.f32.mrf.mxu0
      %v1331 = vpop.f32.mrf.mxu0
      %v1332 = vadd.f32 %v1109, %v1331
      %v1333 = vpop.f32.mrf.mxu0
      %1334 = vmatprep.mubr.bf16.mxu0 0
      %1335 = vmatmul.mubr.bf16.gmra.mxu0 %v1226
      %v1336 = vpop.f32.mrf.mxu0
      %v1337 = vadd.f32 %v1114, %v1336
      %v1338 = vpop.f32.mrf.mxu0
      %v1339 = vpop.f32.mrf.mxu0
      %v1340 = vadd.f32 %v1117, %v1339
      %v1341 = vpop.f32.mrf.mxu0
      %1342 = vmatprep.mubr.bf16.mxu0 0
      %1343 = vmatmul.mubr.bf16.gmra.mxu0 %v1229
      %v1344 = vpop.f32.mrf.mxu0
      %v1345 = vadd.f32 %v1122, %v1344
      %v1346 = vpop.f32.mrf.mxu0
      %v1347 = vpop.f32.mrf.mxu0
      %v1348 = vadd.f32 %v1125, %v1347
      %v1349 = vpop.f32.mrf.mxu0
      %1350 = vmatprep.mubr.bf16.mxu0 0
      %1351 = vmatmul.mubr.bf16.gmra.mxu0 %v1232
      %v1352 = vpop.f32.mrf.mxu0
      %v1353 = vadd.f32 %v1130, %v1352
      %v1354 = vpop.f32.mrf.mxu0
      %v1355 = vpop.f32.mrf.mxu0
      %v1356 = vadd.f32 %v1133, %v1355
      %v1357 = vpop.f32.mrf.mxu0
      %1358 = vmatprep.mubr.bf16.mxu0 0
      %1359 = vmatmul.mubr.bf16.gmra.mxu0 %v1235
      %v1360 = vpop.f32.mrf.mxu0
      %v1361 = vadd.f32 %v1138, %v1360
      %v1362 = vpop.f32.mrf.mxu0
      %v1363 = vpop.f32.mrf.mxu0
      %v1364 = vadd.f32 %v1141, %v1363
      %v1365 = vpop.f32.mrf.mxu0
      %1366 = vmatprep.mubr.bf16.mxu0 0
      %1367 = vmatmul.mubr.bf16.gmra.mxu0 %v1238
      %v1368 = vpop.f32.mrf.mxu0
      %v1369 = vadd.f32 %v1146, %v1368
      %v1370 = vpop.f32.mrf.mxu0
      %v1371 = vpop.f32.mrf.mxu0
      %v1372 = vadd.f32 %v1149, %v1371
      %v1373 = vpop.f32.mrf.mxu0
      %1374 = vmatprep.mubr.bf16.mxu0 0
      %1375 = vmatmul.mubr.bf16.gmra.mxu0 %v1241
      %v1376 = vpop.f32.mrf.mxu0
      %v1377 = vadd.f32 %v1154, %v1376
      %v1378 = vpop.f32.mrf.mxu0
      %v1379 = vpop.f32.mrf.mxu0
      %v1380 = vadd.f32 %v1157, %v1379
      %v1381 = vpop.f32.mrf.mxu0
      %1382 = vmatprep.mubr.bf16.mxu0 0
      %1383 = vmatmul.mubr.bf16.gmra.mxu0 %v1244
      %v1384 = vpop.f32.mrf.mxu0
      %v1385 = vadd.f32 %v1162, %v1384
      %v1386 = vpop.f32.mrf.mxu0
      %v1387 = vpop.f32.mrf.mxu0
      %v1388 = vadd.f32 %v1165, %v1387
      %v1389 = vpop.f32.mrf.mxu0
      %1390 = vmatprep.mubr.bf16.mxu0 0
      %1391 = vmatmul.mubr.bf16.gmra.mxu0 %v1247
      %v1392 = vpop.f32.mrf.mxu0
      %v1393 = vadd.f32 %v1170, %v1392
      %v1394 = vpop.f32.mrf.mxu0
      %v1395 = vpop.f32.mrf.mxu0
      %v1396 = vadd.f32 %v1173, %v1395
      %v1397 = vpop.f32.mrf.mxu0
      %1398 = vmatprep.mubr.bf16.mxu0 0
      %1399 = vmatmul.mubr.bf16.gmra.mxu0 %v1250
      %v1400 = vpop.f32.mrf.mxu0
      %v1401 = vadd.f32 %v1178, %v1400
      %v1402 = vpop.f32.mrf.mxu0
      %v1403 = vpop.f32.mrf.mxu0
      %v1404 = vadd.f32 %v1181, %v1403
      %v1405 = vpop.f32.mrf.mxu0
      %1406 = vmatprep.mubr.bf16.mxu0 0
      %1407 = vmatmul.mubr.bf16.gmra.mxu0 %v1253
      %v1408 = vpop.f32.mrf.mxu0
      %v1409 = vadd.f32 %v1186, %v1408
      %v1410 = vpop.f32.mrf.mxu0
      %v1411 = vpop.f32.mrf.mxu0
      %v1412 = vadd.f32 %v1189, %v1411
      %v1413 = vpop.f32.mrf.mxu0
      %1414 = vmatprep.mubr.bf16.mxu0 0
      %1415 = vmatmul.mubr.bf16.gmra.mxu0 %v1256
      %v1416 = vpop.f32.mrf.mxu0
      %v1417 = vadd.f32 %v1194, %v1416
      %v1418 = vpop.f32.mrf.mxu0
      %v1419 = vpop.f32.mrf.mxu0
      %v1420 = vadd.f32 %v1197, %v1419
      %v1421 = vpop.f32.mrf.mxu0
      %1422 = vdwg.mxu0
      %v1423 = vld [vmem:[%s4] sm:$0x1]
      %v1425 = vlaneseq
      %v1426 = vshrl.u32 %v1425, 7
      %v1427 = vsub.s32 0, %v1426
      %v1428 = vrot.slane %v1423, %v1427
      %v1430 = vadd.f32 %v1297, %v1428
      %v1431 = vadd.f32 %v1300, %v1428
      %v1432 = vadd.f32 %v1305, %v1428
      %v1433 = vadd.f32 %v1308, %v1428
      %v1434 = vadd.f32 %v1313, %v1428
      %v1435 = vadd.f32 %v1316, %v1428
      %v1436 = vadd.f32 %v1321, %v1428
      %v1437 = vadd.f32 %v1324, %v1428
      %v1438 = vadd.f32 %v1329, %v1428
      %v1439 = vadd.f32 %v1332, %v1428
      %v1440 = vadd.f32 %v1337, %v1428
      %v1441 = vadd.f32 %v1340, %v1428
      %v1442 = vadd.f32 %v1345, %v1428
      %v1443 = vadd.f32 %v1348, %v1428
      %v1444 = vadd.f32 %v1353, %v1428
      %v1445 = vadd.f32 %v1356, %v1428
      %v1446 = vadd.f32 %v1361, %v1428
      %v1447 = vadd.f32 %v1364, %v1428
      %v1448 = vadd.f32 %v1369, %v1428
      %v1449 = vadd.f32 %v1372, %v1428
      %v1450 = vadd.f32 %v1377, %v1428
      %v1451 = vadd.f32 %v1380, %v1428
      %v1452 = vadd.f32 %v1385, %v1428
      %v1453 = vadd.f32 %v1388, %v1428
      %v1454 = vadd.f32 %v1393, %v1428
      %v1455 = vadd.f32 %v1396, %v1428
      %v1456 = vadd.f32 %v1401, %v1428
      %v1457 = vadd.f32 %v1404, %v1428
      %v1458 = vadd.f32 %v1409, %v1428
      %v1459 = vadd.f32 %v1412, %v1428
      %v1460 = vadd.f32 %v1417, %v1428
      %v1461 = vadd.f32 %v1420, %v1428
      %v1462 = vmax.f32 %v1430, 0.0
      %v1463 = vmax.f32 %v1431, 0.0
      %v1464 = vmax.f32 %v1432, 0.0
      %v1465 = vmax.f32 %v1433, 0.0
      %v1466 = vmax.f32 %v1434, 0.0
      %v1467 = vmax.f32 %v1435, 0.0
      %v1468 = vmax.f32 %v1436, 0.0
      %v1469 = vmax.f32 %v1437, 0.0
      %v1470 = vmax.f32 %v1438, 0.0
      %v1471 = vmax.f32 %v1439, 0.0
      %v1472 = vmax.f32 %v1440, 0.0
      %v1473 = vmax.f32 %v1441, 0.0
      %v1474 = vmax.f32 %v1442, 0.0
      %v1475 = vmax.f32 %v1443, 0.0
      %v1476 = vmax.f32 %v1444, 0.0
      %v1477 = vmax.f32 %v1445, 0.0
      %v1478 = vmax.f32 %v1446, 0.0
      %v1479 = vmax.f32 %v1447, 0.0
      %v1480 = vmax.f32 %v1448, 0.0
      %v1481 = vmax.f32 %v1449, 0.0
      %v1482 = vmax.f32 %v1450, 0.0
      %v1483 = vmax.f32 %v1451, 0.0
      %v1484 = vmax.f32 %v1452, 0.0
      %v1485 = vmax.f32 %v1453, 0.0
      %v1486 = vmax.f32 %v1454, 0.0
      %v1487 = vmax.f32 %v1455, 0.0
      %v1488 = vmax.f32 %v1456, 0.0
      %v1489 = vmax.f32 %v1457, 0.0
      %v1490 = vmax.f32 %v1458, 0.0
      %v1491 = vmax.f32 %v1459, 0.0
      %v1492 = vmax.f32 %v1460, 0.0
      %v1493 = vmax.f32 %v1461, 0.0
      %v1494 = vpack.c.bf16 %v1463, %v1462
      %v1495 = vpack.c.bf16 %v1465, %v1464
      %v1496 = vpack.c.bf16 %v1467, %v1466
      %v1497 = vpack.c.bf16 %v1469, %v1468
      %v1498 = vpack.c.bf16 %v1471, %v1470
      %v1499 = vpack.c.bf16 %v1473, %v1472
      %v1500 = vpack.c.bf16 %v1475, %v1474
      %v1501 = vpack.c.bf16 %v1477, %v1476
      %v1502 = vpack.c.bf16 %v1479, %v1478
      %v1503 = vpack.c.bf16 %v1481, %v1480
      %v1504 = vpack.c.bf16 %v1483, %v1482
      %v1505 = vpack.c.bf16 %v1485, %v1484
      %v1506 = vpack.c.bf16 %v1487, %v1486
      %v1507 = vpack.c.bf16 %v1489, %v1488
      %v1508 = vpack.c.bf16 %v1491, %v1490
      %v1509 = vpack.c.bf16 %v1493, %v1492
      %v1510 = vld [vmem:[%s5] sm:$0xf]
      %v1511 = vld [vmem:[%s5 + $0x4] sm:$0xf]
      %v1512 = vld [vmem:[%s5 + $0x8] sm:$0xf]
      %v1513 = vld [vmem:[%s5 + $0xc] sm:$0xf]
      %v1514 = vld [vmem:[%s5 + $0x10] sm:$0xf]
      %v1515 = vld [vmem:[%s5 + $0x14] sm:$0xf]
      %v1516 = vld [vmem:[%s5 + $0x18] sm:$0xf]
      %v1517 = vld [vmem:[%s5 + $0x1c] sm:$0xf]
      %v1518 = vld [vmem:[%s6] sm:$0x1]
      %v1520 = vlaneseq
      %v1521 = vshrl.u32 %v1520, 7
      %v1522 = vsub.s32 0, %v1521
      %v1523 = vrot.slane %v1518, %v1522
      %v1533 = vunpack.c.l.b16 %v1510
      %v1534 = vunpack.c.l.b16 %v1511
      %v1535 = vunpack.c.l.b16 %v1512
      %v1536 = vunpack.c.l.b16 %v1513
      %v1537 = vunpack.c.l.b16 %v1514
      %v1538 = vunpack.c.l.b16 %v1515
      %v1539 = vunpack.c.l.b16 %v1516
      %v1540 = vunpack.c.l.b16 %v1517
      %v1541 = vpack.c.b16 %v1534, %v1533
      %v1542 = vpack.c.b16 %v1536, %v1535
      %v1543 = vpack.c.b16 %v1538, %v1537
      %v1544 = vpack.c.b16 %v1540, %v1539
      %vm1549 = vcmask 523264
      %v1551 = vsel %vm1549, %v1494, 0
      %v1554 = vsel %vm1549, %v1495, 0
      %v1557 = vsel %vm1549, %v1496, 0
      %v1560 = vsel %vm1549, %v1497, 0
      %v1563 = vsel %vm1549, %v1498, 0
      %v1566 = vsel %vm1549, %v1499, 0
      %v1569 = vsel %vm1549, %v1500, 0
      %v1572 = vsel %vm1549, %v1501, 0
      %v1575 = vsel %vm1549, %v1502, 0
      %v1578 = vsel %vm1549, %v1503, 0
      %v1581 = vsel %vm1549, %v1504, 0
      %v1584 = vsel %vm1549, %v1505, 0
      %v1587 = vsel %vm1549, %v1506, 0
      %v1590 = vsel %vm1549, %v1507, 0
      %v1593 = vsel %vm1549, %v1508, 0
      %v1596 = vsel %vm1549, %v1509, 0
      %1598 = vmatprep.subr.bf16.mxu0 0
      %1599 = vmatpush1.bf16.msra.mxu0 0
      %1600 = vmatprep.subr.bf16.mxu0 0
      %1601 = vmatpush1.bf16.msra.mxu0 0
      %1602 = vmatprep.subr.bf16.mxu0 0
      %1603 = vmatpush1.bf16.msra.mxu0 0
      %1604 = vmatprep.subr.bf16.mxu0 0
      %1605 = vmatpush1.bf16.msra.mxu0 0
      %1606 = vmatprep.subr.bf16.mxu0 0
      %1607 = vmatpush1.bf16.msra.mxu0 %v1544
      %1608 = vmatprep.subr.bf16.mxu0 0
      %1609 = vmatpush1.bf16.msra.mxu0 %v1543
      %1610 = vmatprep.subr.bf16.mxu0 0
      %1611 = vmatpush1.bf16.msra.mxu0 %v1542
      %1612 = vmatprep.subr.bf16.mxu0 0
      %1613 = vmatpush1.bf16.msra.mxu0 %v1541
      %1614 = vmatprep.subr.bf16.mxu0 0
      %1615 = vmatpush2.bf16.msra.mxu0 0
      %1616 = vmatprep.subr.bf16.mxu0 0
      %1617 = vmatpush2.bf16.msra.mxu0 0
      %1618 = vmatprep.subr.bf16.mxu0 0
      %1619 = vmatpush2.bf16.msra.mxu0 0
      %1620 = vmatprep.subr.bf16.mxu0 0
      %1621 = vmatpush2.bf16.msra.mxu0 0
      %1622 = vmatprep.subr.bf16.mxu0 0
      %1623 = vmatpush2.bf16.msra.mxu0 0
      %1624 = vmatprep.subr.bf16.mxu0 0
      %1625 = vmatpush2.bf16.msra.mxu0 0
      %1626 = vmatprep.subr.bf16.mxu0 0
      %1627 = vmatpush2.bf16.msra.mxu0 0
      %1628 = vmatprep.subr.bf16.mxu0 0
      %1629 = vmatpush2.bf16.msra.mxu0 0
      %1630 = vmatprep.mubr.bf16.mxu0 0
      %1631 = vmatmul.mubr.bf16.gmra.mxu0 %v1551
      %v1632 = vpop.f32.mrf.mxu0
      %v1633 = vadd.f32 %v1523, %v1632
      %v1634 = vpop.f32.mrf.mxu0
      %v1635 = vpop.f32.mrf.mxu0
      %v1636 = vadd.f32 %v1523, %v1635
      %v1637 = vpop.f32.mrf.mxu0
      %1638 = vmatprep.mubr.bf16.mxu0 0
      %1639 = vmatmul.mubr.bf16.gmra.mxu0 %v1554
      %v1640 = vpop.f32.mrf.mxu0
      %v1641 = vadd.f32 %v1523, %v1640
      %v1642 = vpop.f32.mrf.mxu0
      %v1643 = vpop.f32.mrf.mxu0
      %v1644 = vadd.f32 %v1523, %v1643
      %v1645 = vpop.f32.mrf.mxu0
      %1646 = vmatprep.mubr.bf16.mxu0 0
      %1647 = vmatmul.mubr.bf16.gmra.mxu0 %v1557
      %v1648 = vpop.f32.mrf.mxu0
      %v1649 = vadd.f32 %v1523, %v1648
      %v1650 = vpop.f32.mrf.mxu0
      %v1651 = vpop.f32.mrf.mxu0
      %v1652 = vadd.f32 %v1523, %v1651
      %v1653 = vpop.f32.mrf.mxu0
      %1654 = vmatprep.mubr.bf16.mxu0 0
      %1655 = vmatmul.mubr.bf16.gmra.mxu0 %v1560
      %v1656 = vpop.f32.mrf.mxu0
      %v1657 = vadd.f32 %v1523, %v1656
      %v1658 = vpop.f32.mrf.mxu0
      %v1659 = vpop.f32.mrf.mxu0
      %v1660 = vadd.f32 %v1523, %v1659
      %v1661 = vpop.f32.mrf.mxu0
      %1662 = vmatprep.mubr.bf16.mxu0 0
      %1663 = vmatmul.mubr.bf16.gmra.mxu0 %v1563
      %v1664 = vpop.f32.mrf.mxu0
      %v1665 = vadd.f32 %v1523, %v1664
      %v1666 = vpop.f32.mrf.mxu0
      %v1667 = vpop.f32.mrf.mxu0
      %v1668 = vadd.f32 %v1523, %v1667
      %v1669 = vpop.f32.mrf.mxu0
      %1670 = vmatprep.mubr.bf16.mxu0 0
      %1671 = vmatmul.mubr.bf16.gmra.mxu0 %v1566
      %v1672 = vpop.f32.mrf.mxu0
      %v1673 = vadd.f32 %v1523, %v1672
      %v1674 = vpop.f32.mrf.mxu0
      %v1675 = vpop.f32.mrf.mxu0
      %v1676 = vadd.f32 %v1523, %v1675
      %v1677 = vpop.f32.mrf.mxu0
      %1678 = vmatprep.mubr.bf16.mxu0 0
      %1679 = vmatmul.mubr.bf16.gmra.mxu0 %v1569
      %v1680 = vpop.f32.mrf.mxu0
      %v1681 = vadd.f32 %v1523, %v1680
      %v1682 = vpop.f32.mrf.mxu0
      %v1683 = vpop.f32.mrf.mxu0
      %v1684 = vadd.f32 %v1523, %v1683
      %v1685 = vpop.f32.mrf.mxu0
      %1686 = vmatprep.mubr.bf16.mxu0 0
      %1687 = vmatmul.mubr.bf16.gmra.mxu0 %v1572
      %v1688 = vpop.f32.mrf.mxu0
      %v1689 = vadd.f32 %v1523, %v1688
      %v1690 = vpop.f32.mrf.mxu0
      %v1691 = vpop.f32.mrf.mxu0
      %v1692 = vadd.f32 %v1523, %v1691
      %v1693 = vpop.f32.mrf.mxu0
      %1694 = vmatprep.mubr.bf16.mxu0 0
      %1695 = vmatmul.mubr.bf16.gmra.mxu0 %v1575
      %v1696 = vpop.f32.mrf.mxu0
      %v1697 = vadd.f32 %v1523, %v1696
      %v1698 = vpop.f32.mrf.mxu0
      %v1699 = vpop.f32.mrf.mxu0
      %v1700 = vadd.f32 %v1523, %v1699
      %v1701 = vpop.f32.mrf.mxu0
      %1702 = vmatprep.mubr.bf16.mxu0 0
      %1703 = vmatmul.mubr.bf16.gmra.mxu0 %v1578
      %v1704 = vpop.f32.mrf.mxu0
      %v1705 = vadd.f32 %v1523, %v1704
      %v1706 = vpop.f32.mrf.mxu0
      %v1707 = vpop.f32.mrf.mxu0
      %v1708 = vadd.f32 %v1523, %v1707
      %v1709 = vpop.f32.mrf.mxu0
      %1710 = vmatprep.mubr.bf16.mxu0 0
      %1711 = vmatmul.mubr.bf16.gmra.mxu0 %v1581
      %v1712 = vpop.f32.mrf.mxu0
      %v1713 = vadd.f32 %v1523, %v1712
      %v1714 = vpop.f32.mrf.mxu0
      %v1715 = vpop.f32.mrf.mxu0
      %v1716 = vadd.f32 %v1523, %v1715
      %v1717 = vpop.f32.mrf.mxu0
      %1718 = vmatprep.mubr.bf16.mxu0 0
      %1719 = vmatmul.mubr.bf16.gmra.mxu0 %v1584
      %v1720 = vpop.f32.mrf.mxu0
      %v1721 = vadd.f32 %v1523, %v1720
      %v1722 = vpop.f32.mrf.mxu0
      %v1723 = vpop.f32.mrf.mxu0
      %v1724 = vadd.f32 %v1523, %v1723
      %v1725 = vpop.f32.mrf.mxu0
      %1726 = vmatprep.mubr.bf16.mxu0 0
      %1727 = vmatmul.mubr.bf16.gmra.mxu0 %v1587
      %v1728 = vpop.f32.mrf.mxu0
      %v1729 = vadd.f32 %v1523, %v1728
      %v1730 = vpop.f32.mrf.mxu0
      %v1731 = vpop.f32.mrf.mxu0
      %v1732 = vadd.f32 %v1523, %v1731
      %v1733 = vpop.f32.mrf.mxu0
      %1734 = vmatprep.mubr.bf16.mxu0 0
      %1735 = vmatmul.mubr.bf16.gmra.mxu0 %v1590
      %v1736 = vpop.f32.mrf.mxu0
      %v1737 = vadd.f32 %v1523, %v1736
      %v1738 = vpop.f32.mrf.mxu0
      %v1739 = vpop.f32.mrf.mxu0
      %v1740 = vadd.f32 %v1523, %v1739
      %v1741 = vpop.f32.mrf.mxu0
      %1742 = vmatprep.mubr.bf16.mxu0 0
      %1743 = vmatmul.mubr.bf16.gmra.mxu0 %v1593
      %v1744 = vpop.f32.mrf.mxu0
      %v1745 = vadd.f32 %v1523, %v1744
      %v1746 = vpop.f32.mrf.mxu0
      %v1747 = vpop.f32.mrf.mxu0
      %v1748 = vadd.f32 %v1523, %v1747
      %v1749 = vpop.f32.mrf.mxu0
      %1750 = vmatprep.mubr.bf16.mxu0 0
      %1751 = vmatmul.mubr.bf16.gmra.mxu0 %v1596
      %v1752 = vpop.f32.mrf.mxu0
      %v1753 = vadd.f32 %v1523, %v1752
      %v1754 = vpop.f32.mrf.mxu0
      %v1755 = vpop.f32.mrf.mxu0
      %v1756 = vadd.f32 %v1523, %v1755
      %v1757 = vpop.f32.mrf.mxu0
      %1758 = vdwg.mxu0
      %v1759 = vmax.f32 %v1633, 0.0
      %v1760 = vmax.f32 %v1636, 0.0
      %v1761 = vmax.f32 %v1641, 0.0
      %v1762 = vmax.f32 %v1644, 0.0
      %v1763 = vmax.f32 %v1649, 0.0
      %v1764 = vmax.f32 %v1652, 0.0
      %v1765 = vmax.f32 %v1657, 0.0
      %v1766 = vmax.f32 %v1660, 0.0
      %v1767 = vmax.f32 %v1665, 0.0
      %v1768 = vmax.f32 %v1668, 0.0
      %v1769 = vmax.f32 %v1673, 0.0
      %v1770 = vmax.f32 %v1676, 0.0
      %v1771 = vmax.f32 %v1681, 0.0
      %v1772 = vmax.f32 %v1684, 0.0
      %v1773 = vmax.f32 %v1689, 0.0
      %v1774 = vmax.f32 %v1692, 0.0
      %v1775 = vmax.f32 %v1697, 0.0
      %v1776 = vmax.f32 %v1700, 0.0
      %v1777 = vmax.f32 %v1705, 0.0
      %v1778 = vmax.f32 %v1708, 0.0
      %v1779 = vmax.f32 %v1713, 0.0
      %v1780 = vmax.f32 %v1716, 0.0
      %v1781 = vmax.f32 %v1721, 0.0
      %v1782 = vmax.f32 %v1724, 0.0
      %v1783 = vmax.f32 %v1729, 0.0
      %v1784 = vmax.f32 %v1732, 0.0
      %v1785 = vmax.f32 %v1737, 0.0
      %v1786 = vmax.f32 %v1740, 0.0
      %v1787 = vmax.f32 %v1745, 0.0
      %v1788 = vmax.f32 %v1748, 0.0
      %v1789 = vmax.f32 %v1753, 0.0
      %v1790 = vmax.f32 %v1756, 0.0
      %vm1791 = vcmask 261120
      %1792 = vst.msk [vmem:[%s302] sm:$0xff] %vm1791, %v1759
      %1793 = vst.msk [vmem:[%s302 + $0x8] sm:$0xff] %vm1791, %v1760
      %1794 = vst.msk [vmem:[%s302 + $0x10] sm:$0xff] %vm1791, %v1761
      %1795 = vst.msk [vmem:[%s302 + $0x18] sm:$0xff] %vm1791, %v1762
      %1796 = vst.msk [vmem:[%s302 + $0x20] sm:$0xff] %vm1791, %v1763
      %1797 = vst.msk [vmem:[%s302 + $0x28] sm:$0xff] %vm1791, %v1764
      %1798 = vst.msk [vmem:[%s302 + $0x30] sm:$0xff] %vm1791, %v1765
      %1799 = vst.msk [vmem:[%s302 + $0x38] sm:$0xff] %vm1791, %v1766
      %1800 = vst.msk [vmem:[%s302 + $0x40] sm:$0xff] %vm1791, %v1767
      %1801 = vst.msk [vmem:[%s302 + $0x48] sm:$0xff] %vm1791, %v1768
      %1802 = vst.msk [vmem:[%s302 + $0x50] sm:$0xff] %vm1791, %v1769
      %1803 = vst.msk [vmem:[%s302 + $0x58] sm:$0xff] %vm1791, %v1770
      %1804 = vst.msk [vmem:[%s302 + $0x60] sm:$0xff] %vm1791, %v1771
      %1805 = vst.msk [vmem:[%s302 + $0x68] sm:$0xff] %vm1791, %v1772
      %1806 = vst.msk [vmem:[%s302 + $0x70] sm:$0xff] %vm1791, %v1773
      %1807 = vst.msk [vmem:[%s302 + $0x78] sm:$0xff] %vm1791, %v1774
      %1808 = vst.msk [vmem:[%s302 + $0x80] sm:$0xff] %vm1791, %v1775
      %1809 = vst.msk [vmem:[%s302 + $0x88] sm:$0xff] %vm1791, %v1776
      %1810 = vst.msk [vmem:[%s302 + $0x90] sm:$0xff] %vm1791, %v1777
      %1811 = vst.msk [vmem:[%s302 + $0x98] sm:$0xff] %vm1791, %v1778
      %1812 = vst.msk [vmem:[%s302 + $0xa0] sm:$0xff] %vm1791, %v1779
      %1813 = vst.msk [vmem:[%s302 + $0xa8] sm:$0xff] %vm1791, %v1780
      %1814 = vst.msk [vmem:[%s302 + $0xb0] sm:$0xff] %vm1791, %v1781
      %1815 = vst.msk [vmem:[%s302 + $0xb8] sm:$0xff] %vm1791, %v1782
      %1816 = vst.msk [vmem:[%s302 + $0xc0] sm:$0xff] %vm1791, %v1783
      %1817 = vst.msk [vmem:[%s302 + $0xc8] sm:$0xff] %vm1791, %v1784
      %1818 = vst.msk [vmem:[%s302 + $0xd0] sm:$0xff] %vm1791, %v1785
      %1819 = vst.msk [vmem:[%s302 + $0xd8] sm:$0xff] %vm1791, %v1786
      %1820 = vst.msk [vmem:[%s302 + $0xe0] sm:$0xff] %vm1791, %v1787
      %1821 = vst.msk [vmem:[%s302 + $0xe8] sm:$0xff] %vm1791, %v1788
      %1822 = vst.msk [vmem:[%s302 + $0xf0] sm:$0xff] %vm1791, %v1789
      %1823 = vst.msk [vmem:[%s302 + $0xf8] sm:$0xff] %vm1791, %v1790
      %s1824 = smul.u32 32, %s18
      %p1825 = scmp.lt.s32.totalorder %s1824, 63
      %s1826 = scalar_select %p1825, %s1824, 63
      %s1827 = smul.addr %s1826, 8
      %s1828 = scalar_lea.vmem %s7, %s1827
      // Predicated region
      $region49: #{embed_nn_forward.1} parent=47 // pred_check
        %p1829 = pneg %p193
      $region50: #{embed_nn_forward.1} parent=47 // pred_check_branch
        %1831 = sbr.rel (%p1829) target = $region52
      $region51: #{embed_nn_forward.1} parent=47 // pred_region
        %s1832 = smul.u32 32, %s18
      $region52: #{embed_nn_forward.1} parent=47 // pred_fallthru
        _
    $region48: #{embed_nn_forward.1} parent=5 // pred_fallthru
      _
    %p1833 = scmp.le.s32.totalorder 2, %s13
    // Predicated region
    $region53: #{embed_nn_forward.1} parent=5 // pred_check
      %p1834 = pneg %p1833
    $region54: #{embed_nn_forward.1} parent=5 // pred_check_branch
      %1836 = sbr.rel (%p1834) target = $region56
    $region55: #{embed_nn_forward.1} parent=5 // pred_region
      %s1837 = ssub.s32 %s13, 2
      // Predicated region
      $region57: #{embed_nn_forward.1} parent=55 // pred_check
        %p1838 = pneg %p199
      $region58: #{embed_nn_forward.1} parent=55 // pred_check_branch
        %1840 = sbr.rel (%p1838) target = $region60
      $region59: #{embed_nn_forward.1} parent=55 // pred_region
        %s1841 = smul.u32 32, %s19
        %p1842 = scmp.lt.s32.totalorder %s1841, 63
        %s1843 = scalar_select %p1842, %s1841, 63
        %s1844 = smul.addr %s1843, 8
        %s1845 = scalar_lea.vmem %s7, %s1844
      $region60: #{embed_nn_forward.1} parent=55 // pred_fallthru
        _
    $region56: #{embed_nn_forward.1} parent=5 // pred_fallthru
      _
  $region6: #{embed_nn_forward.1} parent=0 // loop_footer
    %s17 = sadd.s32 1, %s13
  $region7: #{embed_nn_forward.1} parent=0 // loop_footer_branch
    %12 = sbr.rel target = $region3
  $region8: #{embed_nn_forward.1} parent=0 // loop_exit
    _

</llo_original>
